<compile_context>
chip_gen: v7x
topology: tpu7x:2x2x1
jax: 0.10.0
libtpu: 0.0.40
codegen_flags: <defaults>
</compile_context>

<pallas_src>
import functools
import math

import numpy as np
import jax
import jax.numpy as jnp
from jax import lax
from jax.experimental import pallas as pl
from jax.experimental.pallas import tpu as pltpu


def _build_pool_matrix(feature_map: int, n_windows: int) -> np.ndarray:
    """(1 + n_windows**2, H*W) matrix: row 0 = global average (AvgPool2d(kernel=H)),
    rows 1.. = AdaptiveAvgPool2d(n_windows) bins in (h_out, w_out) row-major order
    (matching .permute(0,2,3,1).reshape(B, -1, C))."""
    H = W = feature_map
    P = H * W
    S = 1 + n_windows * n_windows
    pool = np.zeros((S, P), dtype=np.float32)

    pool[0, :] = 1.0 / P  # global mean

    def bins(n, size):
        # PyTorch adaptive-pool bin boundaries: [floor(i*size/n), ceil((i+1)*size/n))
        return [((i * size) // n, -((-(i + 1) * size) // n)) for i in range(n)]

    hb = bins(n_windows, H)
    wb = bins(n_windows, W)
    for i, (hs, he) in enumerate(hb):
        for j, (ws, we) in enumerate(wb):
            s = 1 + i * n_windows + j
            w = 1.0 / ((he - hs) * (we - ws))
            for hh in range(hs, he):
                for ww in range(ws, we):
                    pool[s, hh * W + ww] = w
    return pool


def _image_encoder_kernel(feat_ref, pool_ref, wt_ref, bias_ref, out_ref, *, negative_slope):
    """One TB-sized batch tile per grid step.
       feat_ref: (TB, C, P) bf16; pool_ref: (S_pad, P) f32; wt_ref: (C, O) bf16;
       bias_ref: (1, O) f32; out_ref: (TB*S_pad, O)."""
    tb = feat_ref.shape[0]
    pool = pool_ref[...]                                           # (S_pad, P) f32

    # Per-batch-element pooling matmuls (M = S_pad small, N = C large -> good MXU
    # orientation; ~2% of the FLOPs).  f32 accumulation, pool weights kept in f32.
    pooled = []
    for b in range(tb):                                            # static unroll, TB small
        fb = feat_ref[b].astype(jnp.float32)                       # (C, P)
        pooled.append(lax.dot_general(
            pool, fb,
            dimension_numbers=(((1,), (1,)), ((), ())),            # contract over P
            preferred_element_type=jnp.float32))                   # (S_pad, C)

    # S_pad % 8 == 0 -> sublane-aligned concat, no relayout.
    act = jnp.concatenate(pooled, axis=0)                          # (TB*S_pad, C) f32

    # LeakyReLU(0.1) on the VPU, in f32.
    act = jnp.where(act >= 0, act, negative_slope * act)

    # Single big MXU matmul: (TB*S_pad, C) x (C, O), bf16 inputs, f32 accumulation.
    out = lax.dot_general(
        act.astype(wt_ref.dtype), wt_ref[...],
        dimension_numbers=(((1,), (0,)), ((), ())),
        preferred_element_type=jnp.float32)                        # (TB*S_pad, O)

    out_ref[...] = (out + bias_ref[...]).astype(out_ref.dtype)     # lane-dense store


def _pick_batch_tile(batch: int, target: int = 8) -> int:
    """Largest divisor of `batch` <= target that (if possible) leaves grid length >= 2."""
    divisors = [d for d in range(1, batch + 1) if batch % d == 0 and d <= target]
    multi_step = [d for d in divisors if batch // d >= 2]
    return max(multi_step) if multi_step else max(divisors)


def image_encoder_forward(image_feature, pool_matrix, w_linear, b_linear, *,
                          negative_slope=0.1, batch_tile=None, out_dtype=jnp.float32):
    """
    Args:
      image_feature: (B, C, H, W) float32 backbone feature map (H == W).
      pool_matrix:   (S, H*W) float32 pooling matrix from _build_pool_matrix, S = 1 + n_windows**2.
      w_linear:      (O, C) float32, PyTorch nn.Linear weight layout (out, in).
      b_linear:      (O,) float32 bias.
    Returns:
      (B, S, O) encoded features.
    """
    B, C, H, W = image_feature.shape
    assert H == W, "ImageEncoder assumes a square feature map"
    P = H * W
    S = pool_matrix.shape[0]
    O, C2 = w_linear.shape
    assert C == C2 and pool_matrix.shape == (S, P) and b_linear.shape == (O,)

    tb = _pick_batch_tile(B) if batch_tile is None else batch_tile
    assert B % tb == 0, "batch must be divisible by the batch tile"

    # Pad pooled-row count to a sublane multiple (zero rows) so in-kernel concat and the
    # output store stay tile-aligned; pad rows are sliced off below.
    s_pad = -(-S // 8) * 8
    pool_pad = jnp.zeros((s_pad, P), jnp.float32).at[:S].set(pool_matrix.astype(jnp.float32))

    feat = image_feature.reshape(B, C, P).astype(jnp.bfloat16)     # free reshape + bf16 stream
    w_t = jnp.transpose(w_linear).astype(jnp.bfloat16)             # (C, O), one-time transform
    bias = b_linear.reshape(1, O).astype(jnp.float32)

    kernel = functools.partial(_image_encoder_kernel, negative_slope=negative_slope)

    out_flat = pl.pallas_call(
        kernel,
        out_shape=jax.ShapeDtypeStruct((B * s_pad, O), out_dtype),
        grid_spec=pltpu.PrefetchScalarGridSpec(
            num_scalar_prefetch=0,
            grid=(B // tb,),
            in_specs=[
                pl.BlockSpec((tb, C, P), lambda i: (i, 0, 0)),     # streamed per-tile features
                pl.BlockSpec((s_pad, P), lambda i: (0, 0)),        # pooling matrix (resident)
                pl.BlockSpec((C, O),     lambda i: (0, 0)),        # linear weight (resident)
                pl.BlockSpec((1, O),     lambda i: (0, 0)),        # bias (resident)
            ],
            out_specs=pl.BlockSpec((tb * s_pad, O), lambda i: (i, 0)),
        ),
        compiler_params=pltpu.CompilerParams(
            dimension_semantics=("parallel",),                     # shard batch tiles across TCs
            vmem_limit_bytes=64 * 1024 * 1024,
        ),
    )(feat, pool_pad, w_t, bias)

    return out_flat.reshape(B, s_pad, O)[:, :S, :]


def image_encoder_reference(image_feature, w_linear, b_linear, *, n_windows=4, negative_slope=0.1):
    """Pure-JAX f32 reference mirroring the PyTorch forward (given the backbone feature map)."""
    B, C, H, W = image_feature.shape
    avg_feature = jnp.mean(image_feature, axis=(2, 3))[:, None, :]          # (B, 1, C)

    def bins(n, size):
        return [((i * size) // n, -((-(i + 1) * size) // n)) for i in range(n)]

    hb, wb = bins(n_windows, H), bins(n_windows, W)
    rows = []
    for (hs, he) in hb:
        for (ws, we) in wb:
            rows.append(jnp.mean(image_feature[:, :, hs:he, ws:we], axis=(2, 3)))
    windows = jnp.stack(rows, axis=1)                                       # (B, n*n, C)

    overall = jnp.concatenate([avg_feature, windows], axis=1)               # (B, 1+n*n, C)
    overall = jnp.where(overall >= 0, overall, negative_slope * overall)    # LeakyReLU(0.1)
    return overall @ w_linear.T + b_linear


if __name__ == "__main__":
    # Small, module-consistent shapes (production: C=O=1280, 7x7 map, 4 windows).
    # B=16 with TB=8 exercises the batch-tiled grid (length 2, even).
    B, C, FM, NWIN, OUT = 16, 128, 7, 4, 128

    key = jax.random.PRNGKey(0)
    k_feat, k_w, k_b = jax.random.split(key, 3)

    image_feature = jax.random.normal(k_feat, (B, C, FM, FM), dtype=jnp.float32)

    # Deterministic nn.Linear-style init: U(-1/sqrt(C), 1/sqrt(C)), weight shape (out, in).
    bound = 1.0 / math.sqrt(C)
    w_linear = jax.random.uniform(k_w, (OUT, C), jnp.float32, -bound, bound)
    b_linear = jax.random.uniform(k_b, (OUT,), jnp.float32, -bound, bound)

    pool_matrix = jnp.asarray(_build_pool_matrix(FM, NWIN))

    out = image_encoder_forward(image_feature, pool_matrix, w_linear, b_linear)
    out = jax.block_until_ready(out)

    ref = image_encoder_reference(image_feature, w_linear, b_linear, n_windows=NWIN)
    assert out.shape == (B, 1 + NWIN * NWIN, OUT)
    max_err = float(jnp.max(jnp.abs(out.astype(jnp.float32) - ref)))
    assert jnp.allclose(out.astype(jnp.float32), ref, atol=1e-2, rtol=1e-2), (
        f"mismatch vs reference, max abs err = {max_err}")
    print("KERNEL_OK")
</pallas_src>

<mosaic_0001>
module attributes {stable_mosaic.version = 11 : i64} {
  func.func @_image_encoder_kernel(%arg0: i32, %arg1: memref<8x128x49xbf16, #tpu.memory_space<vmem>>, %arg2: memref<24x49xf32, #tpu.memory_space<vmem>>, %arg3: memref<128x128xbf16, #tpu.memory_space<vmem>>, %arg4: memref<1x128xf32, #tpu.memory_space<vmem>>, %arg5: memref<192x128xf32, #tpu.memory_space<vmem>>) attributes {dimension_semantics = [#tpu.dimension_semantics<parallel>], iteration_bounds = array<i64: 2>, scalar_prefetch = 0 : i64, scratch_operands = 0 : i64, tpu.core_type = #tpu.core_type<tc>, window_params = [{transform_indices = @transform_0, window_bounds = array<i64: 8, 128, 49>}, {pipeline_mode = #tpu.pipeline_mode<synchronous>, transform_indices = @transform_1, window_bounds = array<i64: 24, 49>}, {pipeline_mode = #tpu.pipeline_mode<synchronous>, transform_indices = @transform_2, window_bounds = array<i64: 128, 128>}, {pipeline_mode = #tpu.pipeline_mode<synchronous>, transform_indices = @transform_3, window_bounds = array<i64: 1, 128>}, {transform_indices = @transform_4, window_bounds = array<i64: 192, 128>}]} {
    %c0 = arith.constant 0 : index
    %c0_0 = arith.constant 0 : index
    %0 = vector.load %arg2[%c0, %c0_0] : memref<24x49xf32, #tpu.memory_space<vmem>>, vector<24x49xf32>
    %c0_1 = arith.constant 0 : index
    %c0_2 = arith.constant 0 : index
    %c0_3 = arith.constant 0 : index
    %1 = vector.load %arg1[%c0_1, %c0_2, %c0_3] : memref<8x128x49xbf16, #tpu.memory_space<vmem>>, vector<1x128x49xbf16>
    %2 = vector.shape_cast %1 : vector<1x128x49xbf16> to vector<128x49xbf16>
    %3 = arith.extf %2 : vector<128x49xbf16> to vector<128x49xf32>
    %cst = arith.constant dense<0.000000e+00> : vector<24x128xf32>
    %4 = tpu.matmul %0, %3, %cst {dimension_numbers = #tpu.dot_dimension_numbers<[1], [1], [0], [0], [0, 0, 1, 0], [], []>} : vector<24x49xf32>, vector<128x49xf32>, vector<24x128xf32> -> vector<24x128xf32>
    %c1 = arith.constant 1 : index
    %c0_4 = arith.constant 0 : index
    %c0_5 = arith.constant 0 : index
    %5 = vector.load %arg1[%c1, %c0_4, %c0_5] : memref<8x128x49xbf16, #tpu.memory_space<vmem>>, vector<1x128x49xbf16>
    %6 = vector.shape_cast %5 : vector<1x128x49xbf16> to vector<128x49xbf16>
    %7 = arith.extf %6 : vector<128x49xbf16> to vector<128x49xf32>
    %cst_6 = arith.constant dense<0.000000e+00> : vector<24x128xf32>
    %8 = tpu.matmul %0, %7, %cst_6 {dimension_numbers = #tpu.dot_dimension_numbers<[1], [1], [0], [0], [0, 0, 1, 0], [], []>} : vector<24x49xf32>, vector<128x49xf32>, vector<24x128xf32> -> vector<24x128xf32>
    %c2 = arith.constant 2 : index
    %c0_7 = arith.constant 0 : index
    %c0_8 = arith.constant 0 : index
    %9 = vector.load %arg1[%c2, %c0_7, %c0_8] : memref<8x128x49xbf16, #tpu.memory_space<vmem>>, vector<1x128x49xbf16>
    %10 = vector.shape_cast %9 : vector<1x128x49xbf16> to vector<128x49xbf16>
    %11 = arith.extf %10 : vector<128x49xbf16> to vector<128x49xf32>
    %cst_9 = arith.constant dense<0.000000e+00> : vector<24x128xf32>
    %12 = tpu.matmul %0, %11, %cst_9 {dimension_numbers = #tpu.dot_dimension_numbers<[1], [1], [0], [0], [0, 0, 1, 0], [], []>} : vector<24x49xf32>, vector<128x49xf32>, vector<24x128xf32> -> vector<24x128xf32>
    %c3 = arith.constant 3 : index
    %c0_10 = arith.constant 0 : index
    %c0_11 = arith.constant 0 : index
    %13 = vector.load %arg1[%c3, %c0_10, %c0_11] : memref<8x128x49xbf16, #tpu.memory_space<vmem>>, vector<1x128x49xbf16>
    %14 = vector.shape_cast %13 : vector<1x128x49xbf16> to vector<128x49xbf16>
    %15 = arith.extf %14 : vector<128x49xbf16> to vector<128x49xf32>
    %cst_12 = arith.constant dense<0.000000e+00> : vector<24x128xf32>
    %16 = tpu.matmul %0, %15, %cst_12 {dimension_numbers = #tpu.dot_dimension_numbers<[1], [1], [0], [0], [0, 0, 1, 0], [], []>} : vector<24x49xf32>, vector<128x49xf32>, vector<24x128xf32> -> vector<24x128xf32>
    %c4 = arith.constant 4 : index
    %c0_13 = arith.constant 0 : index
    %c0_14 = arith.constant 0 : index
    %17 = vector.load %arg1[%c4, %c0_13, %c0_14] : memref<8x128x49xbf16, #tpu.memory_space<vmem>>, vector<1x128x49xbf16>
    %18 = vector.shape_cast %17 : vector<1x128x49xbf16> to vector<128x49xbf16>
    %19 = arith.extf %18 : vector<128x49xbf16> to vector<128x49xf32>
    %cst_15 = arith.constant dense<0.000000e+00> : vector<24x128xf32>
    %20 = tpu.matmul %0, %19, %cst_15 {dimension_numbers = #tpu.dot_dimension_numbers<[1], [1], [0], [0], [0, 0, 1, 0], [], []>} : vector<24x49xf32>, vector<128x49xf32>, vector<24x128xf32> -> vector<24x128xf32>
    %c5 = arith.constant 5 : index
    %c0_16 = arith.constant 0 : index
    %c0_17 = arith.constant 0 : index
    %21 = vector.load %arg1[%c5, %c0_16, %c0_17] : memref<8x128x49xbf16, #tpu.memory_space<vmem>>, vector<1x128x49xbf16>
    %22 = vector.shape_cast %21 : vector<1x128x49xbf16> to vector<128x49xbf16>
    %23 = arith.extf %22 : vector<128x49xbf16> to vector<128x49xf32>
    %cst_18 = arith.constant dense<0.000000e+00> : vector<24x128xf32>
    %24 = tpu.matmul %0, %23, %cst_18 {dimension_numbers = #tpu.dot_dimension_numbers<[1], [1], [0], [0], [0, 0, 1, 0], [], []>} : vector<24x49xf32>, vector<128x49xf32>, vector<24x128xf32> -> vector<24x128xf32>
    %c6 = arith.constant 6 : index
    %c0_19 = arith.constant 0 : index
    %c0_20 = arith.constant 0 : index
    %25 = vector.load %arg1[%c6, %c0_19, %c0_20] : memref<8x128x49xbf16, #tpu.memory_space<vmem>>, vector<1x128x49xbf16>
    %26 = vector.shape_cast %25 : vector<1x128x49xbf16> to vector<128x49xbf16>
    %27 = arith.extf %26 : vector<128x49xbf16> to vector<128x49xf32>
    %cst_21 = arith.constant dense<0.000000e+00> : vector<24x128xf32>
    %28 = tpu.matmul %0, %27, %cst_21 {dimension_numbers = #tpu.dot_dimension_numbers<[1], [1], [0], [0], [0, 0, 1, 0], [], []>} : vector<24x49xf32>, vector<128x49xf32>, vector<24x128xf32> -> vector<24x128xf32>
    %c7 = arith.constant 7 : index
    %c0_22 = arith.constant 0 : index
    %c0_23 = arith.constant 0 : index
    %29 = vector.load %arg1[%c7, %c0_22, %c0_23] : memref<8x128x49xbf16, #tpu.memory_space<vmem>>, vector<1x128x49xbf16>
    %30 = vector.shape_cast %29 : vector<1x128x49xbf16> to vector<128x49xbf16>
    %31 = arith.extf %30 : vector<128x49xbf16> to vector<128x49xf32>
    %cst_24 = arith.constant dense<0.000000e+00> : vector<24x128xf32>
    %32 = tpu.matmul %0, %31, %cst_24 {dimension_numbers = #tpu.dot_dimension_numbers<[1], [1], [0], [0], [0, 0, 1, 0], [], []>} : vector<24x49xf32>, vector<128x49xf32>, vector<24x128xf32> -> vector<24x128xf32>
    %33 = tpu.concatenate %4, %8, %12, %16, %20, %24, %28, %32 in 0 : vector<24x128xf32>, vector<24x128xf32>, vector<24x128xf32>, vector<24x128xf32>, vector<24x128xf32>, vector<24x128xf32>, vector<24x128xf32>, vector<24x128xf32> -> vector<192x128xf32>
    %cst_25 = arith.constant 0.000000e+00 : f32
    %34 = vector.broadcast %cst_25 : f32 to vector<192x128xf32>
    %35 = arith.cmpf oge, %33, %34 : vector<192x128xf32>
    %cst_26 = arith.constant 1.000000e-01 : f32
    %36 = vector.broadcast %cst_26 : f32 to vector<192x128xf32>
    %37 = arith.mulf %36, %33 : vector<192x128xf32>
    %38 = arith.select %35, %33, %37 : vector<192x128xi1>, vector<192x128xf32>
    %39 = arith.truncf %38 : vector<192x128xf32> to vector<192x128xbf16>
    %c0_27 = arith.constant 0 : index
    %c0_28 = arith.constant 0 : index
    %40 = vector.load %arg3[%c0_27, %c0_28] : memref<128x128xbf16, #tpu.memory_space<vmem>>, vector<128x128xbf16>
    %cst_29 = arith.constant dense<0.000000e+00> : vector<192x128xf32>
    %41 = tpu.matmul %39, %40, %cst_29 {dimension_numbers = #tpu.dot_dimension_numbers<[1], [0], [0], [1], [0, 0, 1, 1], [], []>} : vector<192x128xbf16>, vector<128x128xbf16>, vector<192x128xf32> -> vector<192x128xf32>
    %c0_30 = arith.constant 0 : index
    %c0_31 = arith.constant 0 : index
    %42 = vector.load %arg4[%c0_30, %c0_31] : memref<1x128xf32, #tpu.memory_space<vmem>>, vector<1x128xf32>
    %43 = vector.broadcast %42 : vector<1x128xf32> to vector<192x128xf32>
    %44 = arith.addf %41, %43 : vector<192x128xf32>
    %c0_32 = arith.constant 0 : index
    %c0_33 = arith.constant 0 : index
    %45 = vector.load %arg5[%c0_32, %c0_33] : memref<192x128xf32, #tpu.memory_space<vmem>>, vector<192x128xf32>
    tpu.vector_store %arg5[%c0_32, %c0_33], %44 {strides = array<i32>} : memref<192x128xf32, #tpu.memory_space<vmem>>, vector<192x128xf32>,
    return
  }
  func.func @transform_0(%arg0: i32) -> (i32, i32, i32) {
    %c0_i32 = arith.constant 0 : i32
    %c0_i32_0 = arith.constant 0 : i32
    %c0_i32_1 = arith.constant 0 : i32
    return %arg0, %c0_i32, %c0_i32_0 : i32, i32, i32
  }
  func.func @transform_1(%arg0: i32) -> (i32, i32) {
    %c0_i32 = arith.constant 0 : i32
    %c0_i32_0 = arith.constant 0 : i32
    %c0_i32_1 = arith.constant 0 : i32
    return %c0_i32, %c0_i32_0 : i32, i32
  }
  func.func @transform_2(%arg0: i32) -> (i32, i32) {
    %c0_i32 = arith.constant 0 : i32
    %c0_i32_0 = arith.constant 0 : i32
    %c0_i32_1 = arith.constant 0 : i32
    return %c0_i32, %c0_i32_0 : i32, i32
  }
  func.func @transform_3(%arg0: i32) -> (i32, i32) {
    %c0_i32 = arith.constant 0 : i32
    %c0_i32_0 = arith.constant 0 : i32
    %c0_i32_1 = arith.constant 0 : i32
    return %c0_i32, %c0_i32_0 : i32, i32
  }
  func.func @transform_4(%arg0: i32) -> (i32, i32) {
    %c0_i32 = arith.constant 0 : i32
    %c0_i32_0 = arith.constant 0 : i32
    return %arg0, %c0_i32 : i32, i32
  }
}

</mosaic_0001>

<llo_original>
// kernel: tpu_custom_call.1
$region0: #{tpu_custom_call.1}
  #allocation0 [shape = 'u32[]', space=smem, size = 0x4, offset = 0x4, fixed_abs, tag = 'smem constant byte address 0x4 - core index']
  #allocation1 [shape = 'u32[144,128]{1,0:T(1,128)}', space=vmem, size = 0x12000, scoped, tag = 'internal scratch']
  %s0 = inlined_call_operand.hbm [shape: bf16[16,128,49], index: 0, kind: input, shape index: {}]
  %s1 = inlined_call_operand.hbm [shape: f32[24,49], index: 1, kind: input, shape index: {}]
  %s2 = inlined_call_operand.hbm [shape: bf16[128,128], index: 2, kind: input, shape index: {}]
  %s3 = inlined_call_operand.hbm [shape: f32[1,128], index: 3, kind: input, shape index: {}]
  %s4 = inlined_call_operand.hbm [shape: f32[384,128], index: 4, kind: output, shape index: {}]
  %s5 = sld [smem:[#allocation0]]
  $region65: #{tpu_custom_call.1} parent=0
    _
  %s7 = ssub.s32 1, %s5
  %s8 = scalar_select 0, %s7, %s5
  $region1: #{tpu_custom_call.1} parent=0
    #allocation2 [shape = 'u8[524288]{0}', space=vmem, size = 0x80000, scoped, tag = 'input window, operand 0']
    #allocation3 [shape = 's32[2]{0}', space=sflag, size = 0x8, scoped, tag = 'scoped memory for tpu_custom_call.1']
    #allocation4 [shape = 's32[2]{0}', space=sflag, size = 0x8, scoped, tag = 'scoped memory for tpu_custom_call.1']
    #allocation5 [shape = 'u8[12288]{0}', space=vmem, size = 0x3000, scoped, tag = 'input window, operand 1, single buffered']
    #allocation6 [shape = 's32[1]{0}', space=sflag, size = 0x4, scoped, tag = 'scoped memory for tpu_custom_call.1']
    #allocation7 [shape = 'u8[32768]{0}', space=vmem, size = 0x8000, scoped, tag = 'input window, operand 2, single buffered']
    #allocation8 [shape = 'u8[512]{0}', space=vmem, size = 0x400, scoped, tag = 'input window, operand 3, single buffered']
    #allocation9 [shape = 's32[1]{0}', space=sflag, size = 0x4, scoped, tag = 'scoped memory for tpu_custom_call.1']
    #allocation10 [shape = 'u8[196608]{0}', space=vmem, size = 0x30000, scoped, tag = 'output window, operand 0']
    %9 = vsyncpa [#allocation3], 0
    %s10 = scalar_lea.sflag [#allocation3], 1
    %11 = vsyncpa %s10, 0
    %12 = vsyncpa [#allocation6], 0
    %13 = vsyncpa [#allocation9], 0
    %14 = vsyncpa [#allocation4], 0
    %s15 = scalar_lea.sflag [#allocation4], 1
    %16 = vsyncpa %s15, 0
    loop: start=0, step=1, limit=4
    $region2: #{tpu_custom_call.1} parent=1 // loop_pre_header
      _
    $region3: #{tpu_custom_call.1} parent=1 // loop_header
      %s18 = sphi 0, %s22
      %p19 = scmp.ge.s32.totalorder %s18, 4
      %s28 = sphi 0, %s30
      %s31 = sphi 0, %s28
      %s32 = sphi 0, %s31
      %s48 = sphi 0, %s32
      %s52 = sphi 0, %s52
      %s54 = sphi 0, %s52
      %s55 = sphi 0, %s54
      %s69 = sphi 0, %s55
      %s73 = sphi 0, %s73
      %s75 = sphi 0, %s73
      %s76 = sphi 0, %s75
      %s90 = sphi 0, %s76
      %s94 = sphi 0, %s94
      %s96 = sphi 0, %s94
      %s97 = sphi 0, %s96
      %s111 = sphi 0, %s97
      %s117 = sphi 0, %s119
      %s120 = sphi 0, %s117
      %s121 = sphi 0, %s120
      %s137 = sphi 0, %s121
    $region4: #{tpu_custom_call.1} parent=1 // loop_header_branch
      %21 = sbr.rel (%p19) target = $region8
    $region5: #{tpu_custom_call.1} parent=1 // loop_body
      %s23 = ssub.s32 %s18, 1
      %s24 = ssub.s32 %s18, 2
      %s25 = sadd.s32 %s18, 1
      %s26 = ssub.s32 %s18, %s25
      %p27 = scmp.eq.s32.totalorder %s26, 0
      %s29 = sadd.s32 %s28, 1
      %s30 = scalar_select %p27, %s28, %s29
      %p33 = pneg %p27
      %p34 = scmp.eq.s32.totalorder %s18, 1
      %p35 = por %p33, %p34
      %p36 = scmp.ne.s32.totalorder %s28, %s31
      %p37 = scmp.eq.s32.totalorder %s18, 0
      %p38 = por %p36, %p37
      %p39 = scmp.ne.s32.totalorder %s28, %s31
      %p40 = scmp.eq.s32.totalorder %s23, 1
      %p41 = por %p39, %p40
      %p42 = scmp.ne.s32.totalorder %s31, %s32
      %p43 = scmp.eq.s32.totalorder %s23, 0
      %p44 = por %p42, %p43
      %p45 = scmp.ne.s32.totalorder %s31, %s32
      %p46 = scmp.eq.s32.totalorder %s24, 1
      %p47 = por %p45, %p46
      %p49 = scmp.ne.s32.totalorder %s32, %s48
      %p50 = scmp.eq.s32.totalorder %s24, 0
      %p51 = por %p49, %p50
      %s53 = sadd.s32 %s52, 1
      %p56 = scmp.eq.s32.totalorder %s18, 1
      %p57 = scmp.ne.s32.totalorder %s52, %s54
      %p58 = scmp.eq.s32.totalorder %s18, 0
      %p59 = por %p57, %p58
      %p60 = scmp.ne.s32.totalorder %s52, %s54
      %p61 = scmp.eq.s32.totalorder %s23, 1
      %p62 = por %p60, %p61
      %p63 = scmp.ne.s32.totalorder %s54, %s55
      %p64 = scmp.eq.s32.totalorder %s23, 0
      %p65 = por %p63, %p64
      %p66 = scmp.ne.s32.totalorder %s54, %s55
      %p67 = scmp.eq.s32.totalorder %s24, 1
      %p68 = por %p66, %p67
      %p70 = scmp.ne.s32.totalorder %s55, %s69
      %p71 = scmp.eq.s32.totalorder %s24, 0
      %p72 = por %p70, %p71
      %s74 = sadd.s32 %s73, 1
      %p77 = scmp.eq.s32.totalorder %s18, 1
      %p78 = scmp.ne.s32.totalorder %s73, %s75
      %p79 = scmp.eq.s32.totalorder %s18, 0
      %p80 = por %p78, %p79
      %p81 = scmp.ne.s32.totalorder %s73, %s75
      %p82 = scmp.eq.s32.totalorder %s23, 1
      %p83 = por %p81, %p82
      %p84 = scmp.ne.s32.totalorder %s75, %s76
      %p85 = scmp.eq.s32.totalorder %s23, 0
      %p86 = por %p84, %p85
      %p87 = scmp.ne.s32.totalorder %s75, %s76
      %p88 = scmp.eq.s32.totalorder %s24, 1
      %p89 = por %p87, %p88
      %p91 = scmp.ne.s32.totalorder %s76, %s90
      %p92 = scmp.eq.s32.totalorder %s24, 0
      %p93 = por %p91, %p92
      %s95 = sadd.s32 %s94, 1
      %p98 = scmp.eq.s32.totalorder %s18, 1
      %p99 = scmp.ne.s32.totalorder %s94, %s96
      %p100 = scmp.eq.s32.totalorder %s18, 0
      %p101 = por %p99, %p100
      %p102 = scmp.ne.s32.totalorder %s94, %s96
      %p103 = scmp.eq.s32.totalorder %s23, 1
      %p104 = por %p102, %p103
      %p105 = scmp.ne.s32.totalorder %s96, %s97
      %p106 = scmp.eq.s32.totalorder %s23, 0
      %p107 = por %p105, %p106
      %p108 = scmp.ne.s32.totalorder %s96, %s97
      %p109 = scmp.eq.s32.totalorder %s24, 1
      %p110 = por %p108, %p109
      %p112 = scmp.ne.s32.totalorder %s97, %s111
      %p113 = scmp.eq.s32.totalorder %s24, 0
      %p114 = por %p112, %p113
      %s115 = ssub.s32 %s18, %s25
      %p116 = scmp.eq.s32.totalorder %s115, 0
      %s118 = sadd.s32 %s117, 1
      %s119 = scalar_select %p116, %s117, %s118
      %p122 = pneg %p116
      %p123 = scmp.eq.s32.totalorder %s18, 1
      %p124 = por %p122, %p123
      %p125 = scmp.ne.s32.totalorder %s117, %s120
      %p126 = scmp.eq.s32.totalorder %s18, 0
      %p127 = por %p125, %p126
      %p128 = scmp.ne.s32.totalorder %s117, %s120
      %p129 = scmp.eq.s32.totalorder %s23, 1
      %p130 = por %p128, %p129
      %p131 = scmp.ne.s32.totalorder %s120, %s121
      %p132 = scmp.eq.s32.totalorder %s23, 0
      %p133 = por %p131, %p132
      %p134 = scmp.ne.s32.totalorder %s120, %s121
      %p135 = scmp.eq.s32.totalorder %s24, 1
      %p136 = por %p134, %p135
      %p138 = scmp.ne.s32.totalorder %s121, %s137
      %p139 = scmp.eq.s32.totalorder %s24, 0
      %p140 = por %p138, %p139
      %p141 = scmp.le.s32.totalorder 1, %s18
      %p142 = scmp.lt.s32.totalorder %s18, 3
      %p143 = pnand %p141, %p142
      %p144 = pneg %p143
      // Predicated region
      $region9: #{tpu_custom_call.1} parent=5 // pred_check
        _
      $region10: #{tpu_custom_call.1} parent=5 // pred_check_branch
        %146 = sbr.rel (%p143) target = $region12
      $region11: #{tpu_custom_call.1} parent=5 // pred_region
        %s147 = ssub.s32 %s18, 1
        // Predicated region
        $region13: #{tpu_custom_call.1} parent=11 // pred_check
          %p148 = pneg %p65
        $region14: #{tpu_custom_call.1} parent=11 // pred_check_branch
          %150 = sbr.rel (%p148) target = $region16
        $region15: #{tpu_custom_call.1} parent=11 // pred_region
          %s152 = ssub.s32 384, 384
          %153 = vsyncadd [#allocation6], %s152
          %s154 = sshll.u32 [#allocation5], 4
          %s155 = int_to_ptr.vmem [resolvable:$true] %s154
          %160 = dma.hbm_to_vmem [thread:$0]  %s1, 384, %s155, [#allocation6], 128, 128, 8
        $region16: #{tpu_custom_call.1} parent=11 // pred_fallthru
          _
        // Predicated region
        $region17: #{tpu_custom_call.1} parent=11 // pred_check
          %p161 = pneg %p86
        $region18: #{tpu_custom_call.1} parent=11 // pred_check_branch
          %163 = sbr.rel (%p161) target = $region20
        $region19: #{tpu_custom_call.1} parent=11 // pred_region
          %s165 = ssub.s32 1024, 1024
          %166 = vsyncadd [#allocation6], %s165
          %s167 = sshll.u32 [#allocation7], 4
          %s168 = int_to_ptr.vmem [resolvable:$true] %s167
          %173 = dma.hbm_to_vmem [thread:$0]  %s2, 1024, %s168, [#allocation6], 64, 64, 4
        $region20: #{tpu_custom_call.1} parent=11 // pred_fallthru
          _
        // Predicated region
        $region21: #{tpu_custom_call.1} parent=11 // pred_check
          %p174 = pneg %p107
        $region22: #{tpu_custom_call.1} parent=11 // pred_check_branch
          %176 = sbr.rel (%p174) target = $region24
        $region23: #{tpu_custom_call.1} parent=11 // pred_region
          %s178 = ssub.s32 16, 16
          %179 = vsyncadd [#allocation9], %s178
          %s181 = sshll.u32 [#allocation8], 4
          %s182 = int_to_ptr.vmem [resolvable:$true] %s181
          %184 = dma.hbm_to_vmem [thread:$0]  %s3, 16, %s182, [#allocation9]
        $region24: #{tpu_custom_call.1} parent=11 // pred_fallthru
          _
      $region12: #{tpu_custom_call.1} parent=5 // pred_fallthru
        _
      %p185 = scmp.lt.s32.totalorder %s18, 2
      // Predicated region
      $region25: #{tpu_custom_call.1} parent=5 // pred_check
        %p186 = pneg %p185
      $region26: #{tpu_custom_call.1} parent=5 // pred_check_branch
        %188 = sbr.rel (%p186) target = $region28
      $region27: #{tpu_custom_call.1} parent=5 // pred_region
        // Predicated region
        $region29: #{tpu_custom_call.1} parent=27 // pred_check
          %p189 = pneg %p38
        $region30: #{tpu_custom_call.1} parent=27 // pred_check_branch
          %191 = sbr.rel (%p189) target = $region32
        $region31: #{tpu_custom_call.1} parent=27 // pred_region
          %s192 = sand.u32 %s28, 1
          %s193 = scalar_lea.sflag [#allocation3], %s192
          %s194 = sand.u32 %s28, 1
          %s195 = smul.addr %s194, 512
          %s196 = scalar_lea.vmem [#allocation2], %s195
          %s197 = smul.u32 8, %s18
          %s199 = ssub.s32 8192, 8192
          %200 = vsyncadd %s193, %s199
          %s201 = smul.addr %s197, 16
          %s202 = smul.addr %s201, 64
          %s203 = scalar_lea.hbm %s0, %s202
          %s204 = sshll.u32 %s196, 4
          %s205 = int_to_ptr.vmem [resolvable:$true] %s204
          %210 = dma.hbm_to_vmem [thread:$0]  %s203, 8192, %s205, %s193, 64, 64, 4
        $region32: #{tpu_custom_call.1} parent=27 // pred_fallthru
          _
      $region28: #{tpu_custom_call.1} parent=5 // pred_fallthru
        _
      %p211 = scmp.le.s32.totalorder 1, %s18
      %p212 = scmp.lt.s32.totalorder %s18, 3
      %p213 = pnand %p211, %p212
      %p214 = pneg %p213
      // Predicated region
      $region33: #{tpu_custom_call.1} parent=5 // pred_check
        _
      $region34: #{tpu_custom_call.1} parent=5 // pred_check_branch
        %216 = sbr.rel (%p213) target = $region36
      $region35: #{tpu_custom_call.1} parent=5 // pred_region
        %s217 = ssub.s32 %s18, 1
        %s218 = sand.u32 %s31, 1
        %s219 = scalar_lea.sflag [#allocation3], %s218
        %s220 = sand.u32 %s31, 1
        %s221 = smul.addr %s220, 512
        %s222 = scalar_lea.vmem [#allocation2], %s221
        // Predicated region
        $region37: #{tpu_custom_call.1} parent=35 // pred_check
          %p223 = pneg %p44
        $region38: #{tpu_custom_call.1} parent=35 // pred_check_branch
          %225 = sbr.rel (%p223) target = $region40
        $region39: #{tpu_custom_call.1} parent=35 // pred_region
          %226 = dma.done %s219, 8192
        $region40: #{tpu_custom_call.1} parent=35 // pred_fallthru
          _
        // Predicated region
        $region41: #{tpu_custom_call.1} parent=35 // pred_check
          %p227 = pneg %p65
        $region42: #{tpu_custom_call.1} parent=35 // pred_check_branch
          %229 = sbr.rel (%p227) target = $region44
        $region43: #{tpu_custom_call.1} parent=35 // pred_region
          %230 = dma.done [#allocation6], 384
        $region44: #{tpu_custom_call.1} parent=35 // pred_fallthru
          _
        // Predicated region
        $region45: #{tpu_custom_call.1} parent=35 // pred_check
          %p231 = pneg %p86
        $region46: #{tpu_custom_call.1} parent=35 // pred_check_branch
          %233 = sbr.rel (%p231) target = $region48
        $region47: #{tpu_custom_call.1} parent=35 // pred_region
          %234 = dma.done [#allocation6], 1024
        $region48: #{tpu_custom_call.1} parent=35 // pred_fallthru
          _
        // Predicated region
        $region49: #{tpu_custom_call.1} parent=35 // pred_check
          %p235 = pneg %p107
        $region50: #{tpu_custom_call.1} parent=35 // pred_check_branch
          %237 = sbr.rel (%p235) target = $region52
        $region51: #{tpu_custom_call.1} parent=35 // pred_region
          %238 = dma.done [#allocation9], 16
        $region52: #{tpu_custom_call.1} parent=35 // pred_fallthru
          _
        %s239 = sand.u32 %s31, 1
        %s240 = scalar_lea.sflag [#allocation3], %s239
        %s241 = sand.u32 %s31, 1
        %s242 = smul.addr %s241, 512
        %s243 = scalar_lea.vmem [#allocation2], %s242
        %p244 = pneg %p44
        %p245 = pneg %p41
        %p246 = pneg %p65
        %p247 = pneg %p62
        %p248 = pneg %p86
        %p249 = pneg %p83
        %p250 = pneg %p107
        %p251 = pneg %p104
        %p252 = pneg %p133
        %p253 = pneg %p130
        %s254 = sand.u32 %s120, 1
        %s255 = scalar_lea.sflag [#allocation4], %s254
        %s256 = sand.u32 %s120, 1
        %s257 = smul.addr %s256, 192
        %s258 = scalar_lea.vmem [#allocation10], %s257
        %s259 = smul.u32 8, %s23
        %s260 = smul.u32 24, %s23
        %v262 = vld [vmem:[#allocation5] sm:$0xff]
        %v263 = vld [vmem:[#allocation5 + $0x8] sm:$0xff]
        %v264 = vld [vmem:[#allocation5 + $0x10] sm:$0xff]
        %v265 = vld [vmem:[%s222] sm:$0xf]
        %v266 = vld [vmem:[%s222 + $0x4] sm:$0xf]
        %v267 = vld [vmem:[%s222 + $0x8] sm:$0xf]
        %v268 = vld [vmem:[%s222 + $0xc] sm:$0xf]
        %v269 = vld [vmem:[%s222 + $0x10] sm:$0xf]
        %v270 = vld [vmem:[%s222 + $0x14] sm:$0xf]
        %v271 = vld [vmem:[%s222 + $0x18] sm:$0xf]
        %v272 = vld [vmem:[%s222 + $0x1c] sm:$0xf]
        %v273 = vld [vmem:[%s222 + $0x20] sm:$0xf]
        %v274 = vld [vmem:[%s222 + $0x24] sm:$0xf]
        %v275 = vld [vmem:[%s222 + $0x28] sm:$0xf]
        %v276 = vld [vmem:[%s222 + $0x2c] sm:$0xf]
        %v277 = vld [vmem:[%s222 + $0x30] sm:$0xf]
        %v278 = vld [vmem:[%s222 + $0x34] sm:$0xf]
        %v279 = vld [vmem:[%s222 + $0x38] sm:$0xf]
        %v280 = vld [vmem:[%s222 + $0x3c] sm:$0xf]
        %v281 = vunpack.c.l.bf16 %v265
        %v282 = vunpack.c.l.bf16 %v266
        %v283 = vunpack.c.l.bf16 %v267
        %v284 = vunpack.c.l.bf16 %v268
        %v285 = vunpack.c.l.bf16 %v269
        %v286 = vunpack.c.l.bf16 %v270
        %v287 = vunpack.c.l.bf16 %v271
        %v288 = vunpack.c.l.bf16 %v272
        %v289 = vunpack.c.l.bf16 %v273
        %v290 = vunpack.c.l.bf16 %v274
        %v291 = vunpack.c.l.bf16 %v275
        %v292 = vunpack.c.l.bf16 %v276
        %v293 = vunpack.c.l.bf16 %v277
        %v294 = vunpack.c.l.bf16 %v278
        %v295 = vunpack.c.l.bf16 %v279
        %v296 = vunpack.c.l.bf16 %v280
        %vm297 = vcmask 400384
        %v299 = vsel %vm297, %v262, 0
        %v302 = vsel %vm297, %v263, 0
        %v305 = vsel %vm297, %v264, 0
        %v308 = vsel %vm297, %v281, 0
        %v311 = vsel %vm297, %v282, 0
        %v314 = vsel %vm297, %v283, 0
        %v317 = vsel %vm297, %v284, 0
        %v320 = vsel %vm297, %v285, 0
        %v323 = vsel %vm297, %v286, 0
        %v326 = vsel %vm297, %v287, 0
        %v329 = vsel %vm297, %v288, 0
        %v332 = vsel %vm297, %v289, 0
        %v335 = vsel %vm297, %v290, 0
        %v338 = vsel %vm297, %v291, 0
        %v341 = vsel %vm297, %v292, 0
        %v344 = vsel %vm297, %v293, 0
        %v347 = vsel %vm297, %v294, 0
        %v350 = vsel %vm297, %v295, 0
        %v353 = vsel %vm297, %v296, 0
        %355 = vmatprep.subr.mxu0 0.0
        %356 = vmatpush1.xpose.msra.mxu0 %v308
        %357 = vmatprep.subr.mxu0 0.0
        %358 = vmatpush1.xpose.msra.mxu0 %v311
        %359 = vmatprep.subr.mxu0 0.0
        %360 = vmatpush1.xpose.msra.mxu0 %v314
        %361 = vmatprep.subr.mxu0 0.0
        %362 = vmatpush1.xpose.msra.mxu0 %v317
        %363 = vmatprep.subr.mxu0 0.0
        %364 = vmatpush1.xpose.msra.mxu0 %v320
        %365 = vmatprep.subr.mxu0 0.0
        %366 = vmatpush1.xpose.msra.mxu0 %v323
        %367 = vmatprep.subr.mxu0 0.0
        %368 = vmatpush1.xpose.msra.mxu0 %v326
        %369 = vmatprep.subr.mxu0 0.0
        %370 = vmatpush1.xpose.msra.mxu0 %v329
        %371 = vmatprep.subr.mxu0 0.0
        %372 = vmatpush1.xpose.msra.mxu0 %v332
        %373 = vmatprep.subr.mxu0 0.0
        %374 = vmatpush1.xpose.msra.mxu0 %v335
        %375 = vmatprep.subr.mxu0 0.0
        %376 = vmatpush1.xpose.msra.mxu0 %v338
        %377 = vmatprep.subr.mxu0 0.0
        %378 = vmatpush1.xpose.msra.mxu0 %v341
        %379 = vmatprep.subr.mxu0 0.0
        %380 = vmatpush1.xpose.msra.mxu0 %v344
        %381 = vmatprep.subr.mxu0 0.0
        %382 = vmatpush1.xpose.msra.mxu0 %v347
        %383 = vmatprep.subr.mxu0 0.0
        %384 = vmatpush1.xpose.msra.mxu0 %v350
        %385 = vmatprep.subr.mxu0 0.0
        %386 = vmatpush1.xpose.msra.mxu0 %v353
        %387 = vmatprep.subr.mxu0 0.0
        %388 = vmatpush1.xpose.msra.mxu0 0.0
        %389 = vmatprep.subr.mxu0 0.0
        %390 = vmatpush1.xpose.msra.mxu0 0.0
        %391 = vmatprep.subr.mxu0 0.0
        %392 = vmatpush1.xpose.msra.mxu0 0.0
        %393 = vmatprep.subr.mxu0 0.0
        %394 = vmatpush1.xpose.msra.mxu0 0.0
        %395 = vmatprep.subr.mxu0 0.0
        %396 = vmatpush1.xpose.msra.mxu0 0.0
        %397 = vmatprep.subr.mxu0 0.0
        %398 = vmatpush1.xpose.msra.mxu0 0.0
        %399 = vmatprep.subr.mxu0 0.0
        %400 = vmatpush1.xpose.msra.mxu0 0.0
        %401 = vmatprep.subr.mxu0 0.0
        %402 = vmatpush1.xpose.msra.mxu0 0.0
        %403 = vmatprep.subr.mxu0 0.0
        %404 = vmatpush1.xpose.msra.mxu0 0.0
        %405 = vmatprep.subr.mxu0 0.0
        %406 = vmatpush1.xpose.msra.mxu0 0.0
        %407 = vmatprep.subr.mxu0 0.0
        %408 = vmatpush1.xpose.msra.mxu0 0.0
        %409 = vmatprep.subr.mxu0 0.0
        %410 = vmatpush1.xpose.msra.mxu0 0.0
        %411 = vmatprep.subr.mxu0 0.0
        %412 = vmatpush1.xpose.msra.mxu0 0.0
        %413 = vmatprep.subr.mxu0 0.0
        %414 = vmatpush1.xpose.msra.mxu0 0.0
        %415 = vmatprep.subr.mxu0 0.0
        %416 = vmatpush1.xpose.msra.mxu0 0.0
        %417 = vmatprep.subr.mxu0 0.0
        %418 = vmatpush1.xpose.msra.mxu0 0.0
        %419 = vmatprep.mubr.f32.mxu0 0.0
        %420 = vmatmul.mubr.f32.gmra.mrb[0].mxu0 %v299
        %v421 = vpop.f32.mrb[0].mxu0
        %v422 = vadd.f32 0.0, %v421
        %v423 = vpop.f32.mrb[0].mxu0
        %424 = vmatprep.mubr.f32.mxu0 0.0
        %425 = vmatmul.mubr.f32.gmra.mrb[0].mxu0 %v302
        %v426 = vpop.f32.mrb[0].mxu0
        %v427 = vadd.f32 0.0, %v426
        %v428 = vpop.f32.mrb[0].mxu0
        %429 = vmatprep.mubr.f32.mxu0 0.0
        %430 = vmatmul.mubr.f32.gmra.mrb[0].mxu0 %v305
        %v431 = vpop.f32.mrb[0].mxu0
        %v432 = vadd.f32 0.0, %v431
        %v433 = vpop.f32.mrb[0].mxu0
        %434 = vdwg.mxu0
        %s435 = scalar_lea.vmem %s222, 64 [#allocation2]
        %v436 = vld [vmem:[%s435] sm:$0xf]
        %v437 = vld [vmem:[%s435 + $0x4] sm:$0xf]
        %v438 = vld [vmem:[%s435 + $0x8] sm:$0xf]
        %v439 = vld [vmem:[%s435 + $0xc] sm:$0xf]
        %v440 = vld [vmem:[%s435 + $0x10] sm:$0xf]
        %v441 = vld [vmem:[%s435 + $0x14] sm:$0xf]
        %v442 = vld [vmem:[%s435 + $0x18] sm:$0xf]
        %v443 = vld [vmem:[%s435 + $0x1c] sm:$0xf]
        %v444 = vld [vmem:[%s435 + $0x20] sm:$0xf]
        %v445 = vld [vmem:[%s435 + $0x24] sm:$0xf]
        %v446 = vld [vmem:[%s435 + $0x28] sm:$0xf]
        %v447 = vld [vmem:[%s435 + $0x2c] sm:$0xf]
        %v448 = vld [vmem:[%s435 + $0x30] sm:$0xf]
        %v449 = vld [vmem:[%s435 + $0x34] sm:$0xf]
        %v450 = vld [vmem:[%s435 + $0x38] sm:$0xf]
        %v451 = vld [vmem:[%s435 + $0x3c] sm:$0xf]
        %v452 = vunpack.c.l.bf16 %v436
        %v453 = vunpack.c.l.bf16 %v437
        %v454 = vunpack.c.l.bf16 %v438
        %v455 = vunpack.c.l.bf16 %v439
        %v456 = vunpack.c.l.bf16 %v440
        %v457 = vunpack.c.l.bf16 %v441
        %v458 = vunpack.c.l.bf16 %v442
        %v459 = vunpack.c.l.bf16 %v443
        %v460 = vunpack.c.l.bf16 %v444
        %v461 = vunpack.c.l.bf16 %v445
        %v462 = vunpack.c.l.bf16 %v446
        %v463 = vunpack.c.l.bf16 %v447
        %v464 = vunpack.c.l.bf16 %v448
        %v465 = vunpack.c.l.bf16 %v449
        %v466 = vunpack.c.l.bf16 %v450
        %v467 = vunpack.c.l.bf16 %v451
        %v469 = vsel %vm297, %v452, 0
        %v472 = vsel %vm297, %v453, 0
        %v475 = vsel %vm297, %v454, 0
        %v478 = vsel %vm297, %v455, 0
        %v481 = vsel %vm297, %v456, 0
        %v484 = vsel %vm297, %v457, 0
        %v487 = vsel %vm297, %v458, 0
        %v490 = vsel %vm297, %v459, 0
        %v493 = vsel %vm297, %v460, 0
        %v496 = vsel %vm297, %v461, 0
        %v499 = vsel %vm297, %v462, 0
        %v502 = vsel %vm297, %v463, 0
        %v505 = vsel %vm297, %v464, 0
        %v508 = vsel %vm297, %v465, 0
        %v511 = vsel %vm297, %v466, 0
        %v514 = vsel %vm297, %v467, 0
        %516 = vmatprep.subr.mxu0 0.0
        %517 = vmatpush1.xpose.msra.mxu0 %v469
        %518 = vmatprep.subr.mxu0 0.0
        %519 = vmatpush1.xpose.msra.mxu0 %v472
        %520 = vmatprep.subr.mxu0 0.0
        %521 = vmatpush1.xpose.msra.mxu0 %v475
        %522 = vmatprep.subr.mxu0 0.0
        %523 = vmatpush1.xpose.msra.mxu0 %v478
        %524 = vmatprep.subr.mxu0 0.0
        %525 = vmatpush1.xpose.msra.mxu0 %v481
        %526 = vmatprep.subr.mxu0 0.0
        %527 = vmatpush1.xpose.msra.mxu0 %v484
        %528 = vmatprep.subr.mxu0 0.0
        %529 = vmatpush1.xpose.msra.mxu0 %v487
        %530 = vmatprep.subr.mxu0 0.0
        %531 = vmatpush1.xpose.msra.mxu0 %v490
        %532 = vmatprep.subr.mxu0 0.0
        %533 = vmatpush1.xpose.msra.mxu0 %v493
        %534 = vmatprep.subr.mxu0 0.0
        %535 = vmatpush1.xpose.msra.mxu0 %v496
        %536 = vmatprep.subr.mxu0 0.0
        %537 = vmatpush1.xpose.msra.mxu0 %v499
        %538 = vmatprep.subr.mxu0 0.0
        %539 = vmatpush1.xpose.msra.mxu0 %v502
        %540 = vmatprep.subr.mxu0 0.0
        %541 = vmatpush1.xpose.msra.mxu0 %v505
        %542 = vmatprep.subr.mxu0 0.0
        %543 = vmatpush1.xpose.msra.mxu0 %v508
        %544 = vmatprep.subr.mxu0 0.0
        %545 = vmatpush1.xpose.msra.mxu0 %v511
        %546 = vmatprep.subr.mxu0 0.0
        %547 = vmatpush1.xpose.msra.mxu0 %v514
        %548 = vmatprep.subr.mxu0 0.0
        %549 = vmatpush1.xpose.msra.mxu0 0.0
        %550 = vmatprep.subr.mxu0 0.0
        %551 = vmatpush1.xpose.msra.mxu0 0.0
        %552 = vmatprep.subr.mxu0 0.0
        %553 = vmatpush1.xpose.msra.mxu0 0.0
        %554 = vmatprep.subr.mxu0 0.0
        %555 = vmatpush1.xpose.msra.mxu0 0.0
        %556 = vmatprep.subr.mxu0 0.0
        %557 = vmatpush1.xpose.msra.mxu0 0.0
        %558 = vmatprep.subr.mxu0 0.0
        %559 = vmatpush1.xpose.msra.mxu0 0.0
        %560 = vmatprep.subr.mxu0 0.0
        %561 = vmatpush1.xpose.msra.mxu0 0.0
        %562 = vmatprep.subr.mxu0 0.0
        %563 = vmatpush1.xpose.msra.mxu0 0.0
        %564 = vmatprep.subr.mxu0 0.0
        %565 = vmatpush1.xpose.msra.mxu0 0.0
        %566 = vmatprep.subr.mxu0 0.0
        %567 = vmatpush1.xpose.msra.mxu0 0.0
        %568 = vmatprep.subr.mxu0 0.0
        %569 = vmatpush1.xpose.msra.mxu0 0.0
        %570 = vmatprep.subr.mxu0 0.0
        %571 = vmatpush1.xpose.msra.mxu0 0.0
        %572 = vmatprep.subr.mxu0 0.0
        %573 = vmatpush1.xpose.msra.mxu0 0.0
        %574 = vmatprep.subr.mxu0 0.0
        %575 = vmatpush1.xpose.msra.mxu0 0.0
        %576 = vmatprep.subr.mxu0 0.0
        %577 = vmatpush1.xpose.msra.mxu0 0.0
        %578 = vmatprep.subr.mxu0 0.0
        %579 = vmatpush1.xpose.msra.mxu0 0.0
        %580 = vmatprep.mubr.f32.mxu0 0.0
        %581 = vmatmul.mubr.f32.gmra.mrb[0].mxu0 %v299
        %v582 = vpop.f32.mrb[0].mxu0
        %v583 = vadd.f32 0.0, %v582
        %v584 = vpop.f32.mrb[0].mxu0
        %585 = vmatprep.mubr.f32.mxu0 0.0
        %586 = vmatmul.mubr.f32.gmra.mrb[0].mxu0 %v302
        %v587 = vpop.f32.mrb[0].mxu0
        %v588 = vadd.f32 0.0, %v587
        %v589 = vpop.f32.mrb[0].mxu0
        %590 = vmatprep.mubr.f32.mxu0 0.0
        %591 = vmatmul.mubr.f32.gmra.mrb[0].mxu0 %v305
        %v592 = vpop.f32.mrb[0].mxu0
        %v593 = vadd.f32 0.0, %v592
        %v594 = vpop.f32.mrb[0].mxu0
        %595 = vdwg.mxu0
        %s596 = scalar_lea.vmem %s222, 128 [#allocation2]
        %v597 = vld [vmem:[%s596] sm:$0xf]
        %v598 = vld [vmem:[%s596 + $0x4] sm:$0xf]
        %v599 = vld [vmem:[%s596 + $0x8] sm:$0xf]
        %v600 = vld [vmem:[%s596 + $0xc] sm:$0xf]
        %v601 = vld [vmem:[%s596 + $0x10] sm:$0xf]
        %v602 = vld [vmem:[%s596 + $0x14] sm:$0xf]
        %v603 = vld [vmem:[%s596 + $0x18] sm:$0xf]
        %v604 = vld [vmem:[%s596 + $0x1c] sm:$0xf]
        %v605 = vld [vmem:[%s596 + $0x20] sm:$0xf]
        %v606 = vld [vmem:[%s596 + $0x24] sm:$0xf]
        %v607 = vld [vmem:[%s596 + $0x28] sm:$0xf]
        %v608 = vld [vmem:[%s596 + $0x2c] sm:$0xf]
        %v609 = vld [vmem:[%s596 + $0x30] sm:$0xf]
        %v610 = vld [vmem:[%s596 + $0x34] sm:$0xf]
        %v611 = vld [vmem:[%s596 + $0x38] sm:$0xf]
        %v612 = vld [vmem:[%s596 + $0x3c] sm:$0xf]
        %v613 = vunpack.c.l.bf16 %v597
        %v614 = vunpack.c.l.bf16 %v598
        %v615 = vunpack.c.l.bf16 %v599
        %v616 = vunpack.c.l.bf16 %v600
        %v617 = vunpack.c.l.bf16 %v601
        %v618 = vunpack.c.l.bf16 %v602
        %v619 = vunpack.c.l.bf16 %v603
        %v620 = vunpack.c.l.bf16 %v604
        %v621 = vunpack.c.l.bf16 %v605
        %v622 = vunpack.c.l.bf16 %v606
        %v623 = vunpack.c.l.bf16 %v607
        %v624 = vunpack.c.l.bf16 %v608
        %v625 = vunpack.c.l.bf16 %v609
        %v626 = vunpack.c.l.bf16 %v610
        %v627 = vunpack.c.l.bf16 %v611
        %v628 = vunpack.c.l.bf16 %v612
        %v630 = vsel %vm297, %v613, 0
        %v633 = vsel %vm297, %v614, 0
        %v636 = vsel %vm297, %v615, 0
        %v639 = vsel %vm297, %v616, 0
        %v642 = vsel %vm297, %v617, 0
        %v645 = vsel %vm297, %v618, 0
        %v648 = vsel %vm297, %v619, 0
        %v651 = vsel %vm297, %v620, 0
        %v654 = vsel %vm297, %v621, 0
        %v657 = vsel %vm297, %v622, 0
        %v660 = vsel %vm297, %v623, 0
        %v663 = vsel %vm297, %v624, 0
        %v666 = vsel %vm297, %v625, 0
        %v669 = vsel %vm297, %v626, 0
        %v672 = vsel %vm297, %v627, 0
        %v675 = vsel %vm297, %v628, 0
        %677 = vmatprep.subr.mxu0 0.0
        %678 = vmatpush1.xpose.msra.mxu0 %v630
        %679 = vmatprep.subr.mxu0 0.0
        %680 = vmatpush1.xpose.msra.mxu0 %v633
        %681 = vmatprep.subr.mxu0 0.0
        %682 = vmatpush1.xpose.msra.mxu0 %v636
        %683 = vmatprep.subr.mxu0 0.0
        %684 = vmatpush1.xpose.msra.mxu0 %v639
        %685 = vmatprep.subr.mxu0 0.0
        %686 = vmatpush1.xpose.msra.mxu0 %v642
        %687 = vmatprep.subr.mxu0 0.0
        %688 = vmatpush1.xpose.msra.mxu0 %v645
        %689 = vmatprep.subr.mxu0 0.0
        %690 = vmatpush1.xpose.msra.mxu0 %v648
        %691 = vmatprep.subr.mxu0 0.0
        %692 = vmatpush1.xpose.msra.mxu0 %v651
        %693 = vmatprep.subr.mxu0 0.0
        %694 = vmatpush1.xpose.msra.mxu0 %v654
        %695 = vmatprep.subr.mxu0 0.0
        %696 = vmatpush1.xpose.msra.mxu0 %v657
        %697 = vmatprep.subr.mxu0 0.0
        %698 = vmatpush1.xpose.msra.mxu0 %v660
        %699 = vmatprep.subr.mxu0 0.0
        %700 = vmatpush1.xpose.msra.mxu0 %v663
        %701 = vmatprep.subr.mxu0 0.0
        %702 = vmatpush1.xpose.msra.mxu0 %v666
        %703 = vmatprep.subr.mxu0 0.0
        %704 = vmatpush1.xpose.msra.mxu0 %v669
        %705 = vmatprep.subr.mxu0 0.0
        %706 = vmatpush1.xpose.msra.mxu0 %v672
        %707 = vmatprep.subr.mxu0 0.0
        %708 = vmatpush1.xpose.msra.mxu0 %v675
        %709 = vmatprep.subr.mxu0 0.0
        %710 = vmatpush1.xpose.msra.mxu0 0.0
        %711 = vmatprep.subr.mxu0 0.0
        %712 = vmatpush1.xpose.msra.mxu0 0.0
        %713 = vmatprep.subr.mxu0 0.0
        %714 = vmatpush1.xpose.msra.mxu0 0.0
        %715 = vmatprep.subr.mxu0 0.0
        %716 = vmatpush1.xpose.msra.mxu0 0.0
        %717 = vmatprep.subr.mxu0 0.0
        %718 = vmatpush1.xpose.msra.mxu0 0.0
        %719 = vmatprep.subr.mxu0 0.0
        %720 = vmatpush1.xpose.msra.mxu0 0.0
        %721 = vmatprep.subr.mxu0 0.0
        %722 = vmatpush1.xpose.msra.mxu0 0.0
        %723 = vmatprep.subr.mxu0 0.0
        %724 = vmatpush1.xpose.msra.mxu0 0.0
        %725 = vmatprep.subr.mxu0 0.0
        %726 = vmatpush1.xpose.msra.mxu0 0.0
        %727 = vmatprep.subr.mxu0 0.0
        %728 = vmatpush1.xpose.msra.mxu0 0.0
        %729 = vmatprep.subr.mxu0 0.0
        %730 = vmatpush1.xpose.msra.mxu0 0.0
        %731 = vmatprep.subr.mxu0 0.0
        %732 = vmatpush1.xpose.msra.mxu0 0.0
        %733 = vmatprep.subr.mxu0 0.0
        %734 = vmatpush1.xpose.msra.mxu0 0.0
        %735 = vmatprep.subr.mxu0 0.0
        %736 = vmatpush1.xpose.msra.mxu0 0.0
        %737 = vmatprep.subr.mxu0 0.0
        %738 = vmatpush1.xpose.msra.mxu0 0.0
        %739 = vmatprep.subr.mxu0 0.0
        %740 = vmatpush1.xpose.msra.mxu0 0.0
        %741 = vmatprep.mubr.f32.mxu0 0.0
        %742 = vmatmul.mubr.f32.gmra.mrb[0].mxu0 %v299
        %v743 = vpop.f32.mrb[0].mxu0
        %v744 = vadd.f32 0.0, %v743
        %v745 = vpop.f32.mrb[0].mxu0
        %746 = vmatprep.mubr.f32.mxu0 0.0
        %747 = vmatmul.mubr.f32.gmra.mrb[0].mxu0 %v302
        %v748 = vpop.f32.mrb[0].mxu0
        %v749 = vadd.f32 0.0, %v748
        %v750 = vpop.f32.mrb[0].mxu0
        %751 = vmatprep.mubr.f32.mxu0 0.0
        %752 = vmatmul.mubr.f32.gmra.mrb[0].mxu0 %v305
        %v753 = vpop.f32.mrb[0].mxu0
        %v754 = vadd.f32 0.0, %v753
        %v755 = vpop.f32.mrb[0].mxu0
        %756 = vdwg.mxu0
        %s757 = scalar_lea.vmem %s222, 192 [#allocation2]
        %v758 = vld [vmem:[%s757] sm:$0xf]
        %v759 = vld [vmem:[%s757 + $0x4] sm:$0xf]
        %v760 = vld [vmem:[%s757 + $0x8] sm:$0xf]
        %v761 = vld [vmem:[%s757 + $0xc] sm:$0xf]
        %v762 = vld [vmem:[%s757 + $0x10] sm:$0xf]
        %v763 = vld [vmem:[%s757 + $0x14] sm:$0xf]
        %v764 = vld [vmem:[%s757 + $0x18] sm:$0xf]
        %v765 = vld [vmem:[%s757 + $0x1c] sm:$0xf]
        %v766 = vld [vmem:[%s757 + $0x20] sm:$0xf]
        %v767 = vld [vmem:[%s757 + $0x24] sm:$0xf]
        %v768 = vld [vmem:[%s757 + $0x28] sm:$0xf]
        %v769 = vld [vmem:[%s757 + $0x2c] sm:$0xf]
        %v770 = vld [vmem:[%s757 + $0x30] sm:$0xf]
        %v771 = vld [vmem:[%s757 + $0x34] sm:$0xf]
        %v772 = vld [vmem:[%s757 + $0x38] sm:$0xf]
        %v773 = vld [vmem:[%s757 + $0x3c] sm:$0xf]
        %v774 = vunpack.c.l.bf16 %v758
        %v775 = vunpack.c.l.bf16 %v759
        %v776 = vunpack.c.l.bf16 %v760
        %v777 = vunpack.c.l.bf16 %v761
        %v778 = vunpack.c.l.bf16 %v762
        %v779 = vunpack.c.l.bf16 %v763
        %v780 = vunpack.c.l.bf16 %v764
        %v781 = vunpack.c.l.bf16 %v765
        %v782 = vunpack.c.l.bf16 %v766
        %v783 = vunpack.c.l.bf16 %v767
        %v784 = vunpack.c.l.bf16 %v768
        %v785 = vunpack.c.l.bf16 %v769
        %v786 = vunpack.c.l.bf16 %v770
        %v787 = vunpack.c.l.bf16 %v771
        %v788 = vunpack.c.l.bf16 %v772
        %v789 = vunpack.c.l.bf16 %v773
        %v791 = vsel %vm297, %v774, 0
        %v794 = vsel %vm297, %v775, 0
        %v797 = vsel %vm297, %v776, 0
        %v800 = vsel %vm297, %v777, 0
        %v803 = vsel %vm297, %v778, 0
        %v806 = vsel %vm297, %v779, 0
        %v809 = vsel %vm297, %v780, 0
        %v812 = vsel %vm297, %v781, 0
        %v815 = vsel %vm297, %v782, 0
        %v818 = vsel %vm297, %v783, 0
        %v821 = vsel %vm297, %v784, 0
        %v824 = vsel %vm297, %v785, 0
        %v827 = vsel %vm297, %v786, 0
        %v830 = vsel %vm297, %v787, 0
        %v833 = vsel %vm297, %v788, 0
        %v836 = vsel %vm297, %v789, 0
        %838 = vmatprep.subr.mxu0 0.0
        %839 = vmatpush1.xpose.msra.mxu0 %v791
        %840 = vmatprep.subr.mxu0 0.0
        %841 = vmatpush1.xpose.msra.mxu0 %v794
        %842 = vmatprep.subr.mxu0 0.0
        %843 = vmatpush1.xpose.msra.mxu0 %v797
        %844 = vmatprep.subr.mxu0 0.0
        %845 = vmatpush1.xpose.msra.mxu0 %v800
        %846 = vmatprep.subr.mxu0 0.0
        %847 = vmatpush1.xpose.msra.mxu0 %v803
        %848 = vmatprep.subr.mxu0 0.0
        %849 = vmatpush1.xpose.msra.mxu0 %v806
        %850 = vmatprep.subr.mxu0 0.0
        %851 = vmatpush1.xpose.msra.mxu0 %v809
        %852 = vmatprep.subr.mxu0 0.0
        %853 = vmatpush1.xpose.msra.mxu0 %v812
        %854 = vmatprep.subr.mxu0 0.0
        %855 = vmatpush1.xpose.msra.mxu0 %v815
        %856 = vmatprep.subr.mxu0 0.0
        %857 = vmatpush1.xpose.msra.mxu0 %v818
        %858 = vmatprep.subr.mxu0 0.0
        %859 = vmatpush1.xpose.msra.mxu0 %v821
        %860 = vmatprep.subr.mxu0 0.0
        %861 = vmatpush1.xpose.msra.mxu0 %v824
        %862 = vmatprep.subr.mxu0 0.0
        %863 = vmatpush1.xpose.msra.mxu0 %v827
        %864 = vmatprep.subr.mxu0 0.0
        %865 = vmatpush1.xpose.msra.mxu0 %v830
        %866 = vmatprep.subr.mxu0 0.0
        %867 = vmatpush1.xpose.msra.mxu0 %v833
        %868 = vmatprep.subr.mxu0 0.0
        %869 = vmatpush1.xpose.msra.mxu0 %v836
        %870 = vmatprep.subr.mxu0 0.0
        %871 = vmatpush1.xpose.msra.mxu0 0.0
        %872 = vmatprep.subr.mxu0 0.0
        %873 = vmatpush1.xpose.msra.mxu0 0.0
        %874 = vmatprep.subr.mxu0 0.0
        %875 = vmatpush1.xpose.msra.mxu0 0.0
        %876 = vmatprep.subr.mxu0 0.0
        %877 = vmatpush1.xpose.msra.mxu0 0.0
        %878 = vmatprep.subr.mxu0 0.0
        %879 = vmatpush1.xpose.msra.mxu0 0.0
        %880 = vmatprep.subr.mxu0 0.0
        %881 = vmatpush1.xpose.msra.mxu0 0.0
        %882 = vmatprep.subr.mxu0 0.0
        %883 = vmatpush1.xpose.msra.mxu0 0.0
        %884 = vmatprep.subr.mxu0 0.0
        %885 = vmatpush1.xpose.msra.mxu0 0.0
        %886 = vmatprep.subr.mxu0 0.0
        %887 = vmatpush1.xpose.msra.mxu0 0.0
        %888 = vmatprep.subr.mxu0 0.0
        %889 = vmatpush1.xpose.msra.mxu0 0.0
        %890 = vmatprep.subr.mxu0 0.0
        %891 = vmatpush1.xpose.msra.mxu0 0.0
        %892 = vmatprep.subr.mxu0 0.0
        %893 = vmatpush1.xpose.msra.mxu0 0.0
        %894 = vmatprep.subr.mxu0 0.0
        %895 = vmatpush1.xpose.msra.mxu0 0.0
        %896 = vmatprep.subr.mxu0 0.0
        %897 = vmatpush1.xpose.msra.mxu0 0.0
        %898 = vmatprep.subr.mxu0 0.0
        %899 = vmatpush1.xpose.msra.mxu0 0.0
        %900 = vmatprep.subr.mxu0 0.0
        %901 = vmatpush1.xpose.msra.mxu0 0.0
        %902 = vmatprep.mubr.f32.mxu0 0.0
        %903 = vmatmul.mubr.f32.gmra.mrb[0].mxu0 %v299
        %v904 = vpop.f32.mrb[0].mxu0
        %v905 = vadd.f32 0.0, %v904
        %v906 = vpop.f32.mrb[0].mxu0
        %907 = vmatprep.mubr.f32.mxu0 0.0
        %908 = vmatmul.mubr.f32.gmra.mrb[0].mxu0 %v302
        %v909 = vpop.f32.mrb[0].mxu0
        %v910 = vadd.f32 0.0, %v909
        %v911 = vpop.f32.mrb[0].mxu0
        %912 = vmatprep.mubr.f32.mxu0 0.0
        %913 = vmatmul.mubr.f32.gmra.mrb[0].mxu0 %v305
        %v914 = vpop.f32.mrb[0].mxu0
        %v915 = vadd.f32 0.0, %v914
        %v916 = vpop.f32.mrb[0].mxu0
        %917 = vdwg.mxu0
        %s918 = scalar_lea.vmem %s222, 256 [#allocation2]
        %v919 = vld [vmem:[%s918] sm:$0xf]
        %v920 = vld [vmem:[%s918 + $0x4] sm:$0xf]
        %v921 = vld [vmem:[%s918 + $0x8] sm:$0xf]
        %v922 = vld [vmem:[%s918 + $0xc] sm:$0xf]
        %v923 = vld [vmem:[%s918 + $0x10] sm:$0xf]
        %v924 = vld [vmem:[%s918 + $0x14] sm:$0xf]
        %v925 = vld [vmem:[%s918 + $0x18] sm:$0xf]
        %v926 = vld [vmem:[%s918 + $0x1c] sm:$0xf]
        %v927 = vld [vmem:[%s918 + $0x20] sm:$0xf]
        %v928 = vld [vmem:[%s918 + $0x24] sm:$0xf]
        %v929 = vld [vmem:[%s918 + $0x28] sm:$0xf]
        %v930 = vld [vmem:[%s918 + $0x2c] sm:$0xf]
        %v931 = vld [vmem:[%s918 + $0x30] sm:$0xf]
        %v932 = vld [vmem:[%s918 + $0x34] sm:$0xf]
        %v933 = vld [vmem:[%s918 + $0x38] sm:$0xf]
        %v934 = vld [vmem:[%s918 + $0x3c] sm:$0xf]
        %v935 = vunpack.c.l.bf16 %v919
        %v936 = vunpack.c.l.bf16 %v920
        %v937 = vunpack.c.l.bf16 %v921
        %v938 = vunpack.c.l.bf16 %v922
        %v939 = vunpack.c.l.bf16 %v923
        %v940 = vunpack.c.l.bf16 %v924
        %v941 = vunpack.c.l.bf16 %v925
        %v942 = vunpack.c.l.bf16 %v926
        %v943 = vunpack.c.l.bf16 %v927
        %v944 = vunpack.c.l.bf16 %v928
        %v945 = vunpack.c.l.bf16 %v929
        %v946 = vunpack.c.l.bf16 %v930
        %v947 = vunpack.c.l.bf16 %v931
        %v948 = vunpack.c.l.bf16 %v932
        %v949 = vunpack.c.l.bf16 %v933
        %v950 = vunpack.c.l.bf16 %v934
        %v952 = vsel %vm297, %v935, 0
        %v955 = vsel %vm297, %v936, 0
        %v958 = vsel %vm297, %v937, 0
        %v961 = vsel %vm297, %v938, 0
        %v964 = vsel %vm297, %v939, 0
        %v967 = vsel %vm297, %v940, 0
        %v970 = vsel %vm297, %v941, 0
        %v973 = vsel %vm297, %v942, 0
        %v976 = vsel %vm297, %v943, 0
        %v979 = vsel %vm297, %v944, 0
        %v982 = vsel %vm297, %v945, 0
        %v985 = vsel %vm297, %v946, 0
        %v988 = vsel %vm297, %v947, 0
        %v991 = vsel %vm297, %v948, 0
        %v994 = vsel %vm297, %v949, 0
        %v997 = vsel %vm297, %v950, 0
        %999 = vmatprep.subr.mxu0 0.0
        %1000 = vmatpush1.xpose.msra.mxu0 %v952
        %1001 = vmatprep.subr.mxu0 0.0
        %1002 = vmatpush1.xpose.msra.mxu0 %v955
        %1003 = vmatprep.subr.mxu0 0.0
        %1004 = vmatpush1.xpose.msra.mxu0 %v958
        %1005 = vmatprep.subr.mxu0 0.0
        %1006 = vmatpush1.xpose.msra.mxu0 %v961
        %1007 = vmatprep.subr.mxu0 0.0
        %1008 = vmatpush1.xpose.msra.mxu0 %v964
        %1009 = vmatprep.subr.mxu0 0.0
        %1010 = vmatpush1.xpose.msra.mxu0 %v967
        %1011 = vmatprep.subr.mxu0 0.0
        %1012 = vmatpush1.xpose.msra.mxu0 %v970
        %1013 = vmatprep.subr.mxu0 0.0
        %1014 = vmatpush1.xpose.msra.mxu0 %v973
        %1015 = vmatprep.subr.mxu0 0.0
        %1016 = vmatpush1.xpose.msra.mxu0 %v976
        %1017 = vmatprep.subr.mxu0 0.0
        %1018 = vmatpush1.xpose.msra.mxu0 %v979
        %1019 = vmatprep.subr.mxu0 0.0
        %1020 = vmatpush1.xpose.msra.mxu0 %v982
        %1021 = vmatprep.subr.mxu0 0.0
        %1022 = vmatpush1.xpose.msra.mxu0 %v985
        %1023 = vmatprep.subr.mxu0 0.0
        %1024 = vmatpush1.xpose.msra.mxu0 %v988
        %1025 = vmatprep.subr.mxu0 0.0
        %1026 = vmatpush1.xpose.msra.mxu0 %v991
        %1027 = vmatprep.subr.mxu0 0.0
        %1028 = vmatpush1.xpose.msra.mxu0 %v994
        %1029 = vmatprep.subr.mxu0 0.0
        %1030 = vmatpush1.xpose.msra.mxu0 %v997
        %1031 = vmatprep.subr.mxu0 0.0
        %1032 = vmatpush1.xpose.msra.mxu0 0.0
        %1033 = vmatprep.subr.mxu0 0.0
        %1034 = vmatpush1.xpose.msra.mxu0 0.0
        %1035 = vmatprep.subr.mxu0 0.0
        %1036 = vmatpush1.xpose.msra.mxu0 0.0
        %1037 = vmatprep.subr.mxu0 0.0
        %1038 = vmatpush1.xpose.msra.mxu0 0.0
        %1039 = vmatprep.subr.mxu0 0.0
        %1040 = vmatpush1.xpose.msra.mxu0 0.0
        %1041 = vmatprep.subr.mxu0 0.0
        %1042 = vmatpush1.xpose.msra.mxu0 0.0
        %1043 = vmatprep.subr.mxu0 0.0
        %1044 = vmatpush1.xpose.msra.mxu0 0.0
        %1045 = vmatprep.subr.mxu0 0.0
        %1046 = vmatpush1.xpose.msra.mxu0 0.0
        %1047 = vmatprep.subr.mxu0 0.0
        %1048 = vmatpush1.xpose.msra.mxu0 0.0
        %1049 = vmatprep.subr.mxu0 0.0
        %1050 = vmatpush1.xpose.msra.mxu0 0.0
        %1051 = vmatprep.subr.mxu0 0.0
        %1052 = vmatpush1.xpose.msra.mxu0 0.0
        %1053 = vmatprep.subr.mxu0 0.0
        %1054 = vmatpush1.xpose.msra.mxu0 0.0
        %1055 = vmatprep.subr.mxu0 0.0
        %1056 = vmatpush1.xpose.msra.mxu0 0.0
        %1057 = vmatprep.subr.mxu0 0.0
        %1058 = vmatpush1.xpose.msra.mxu0 0.0
        %1059 = vmatprep.subr.mxu0 0.0
        %1060 = vmatpush1.xpose.msra.mxu0 0.0
        %1061 = vmatprep.subr.mxu0 0.0
        %1062 = vmatpush1.xpose.msra.mxu0 0.0
        %1063 = vmatprep.mubr.f32.mxu0 0.0
        %1064 = vmatmul.mubr.f32.gmra.mrb[0].mxu0 %v299
        %v1065 = vpop.f32.mrb[0].mxu0
        %v1066 = vadd.f32 0.0, %v1065
        %v1067 = vpop.f32.mrb[0].mxu0
        %1068 = vmatprep.mubr.f32.mxu0 0.0
        %1069 = vmatmul.mubr.f32.gmra.mrb[0].mxu0 %v302
        %v1070 = vpop.f32.mrb[0].mxu0
        %v1071 = vadd.f32 0.0, %v1070
        %v1072 = vpop.f32.mrb[0].mxu0
        %1073 = vmatprep.mubr.f32.mxu0 0.0
        %1074 = vmatmul.mubr.f32.gmra.mrb[0].mxu0 %v305
        %v1075 = vpop.f32.mrb[0].mxu0
        %v1076 = vadd.f32 0.0, %v1075
        %v1077 = vpop.f32.mrb[0].mxu0
        %1078 = vdwg.mxu0
        %s1079 = scalar_lea.vmem %s222, 320 [#allocation2]
        %v1080 = vld [vmem:[%s1079] sm:$0xf]
        %v1081 = vld [vmem:[%s1079 + $0x4] sm:$0xf]
        %v1082 = vld [vmem:[%s1079 + $0x8] sm:$0xf]
        %v1083 = vld [vmem:[%s1079 + $0xc] sm:$0xf]
        %v1084 = vld [vmem:[%s1079 + $0x10] sm:$0xf]
        %v1085 = vld [vmem:[%s1079 + $0x14] sm:$0xf]
        %v1086 = vld [vmem:[%s1079 + $0x18] sm:$0xf]
        %v1087 = vld [vmem:[%s1079 + $0x1c] sm:$0xf]
        %v1088 = vld [vmem:[%s1079 + $0x20] sm:$0xf]
        %v1089 = vld [vmem:[%s1079 + $0x24] sm:$0xf]
        %v1090 = vld [vmem:[%s1079 + $0x28] sm:$0xf]
        %v1091 = vld [vmem:[%s1079 + $0x2c] sm:$0xf]
        %v1092 = vld [vmem:[%s1079 + $0x30] sm:$0xf]
        %v1093 = vld [vmem:[%s1079 + $0x34] sm:$0xf]
        %v1094 = vld [vmem:[%s1079 + $0x38] sm:$0xf]
        %v1095 = vld [vmem:[%s1079 + $0x3c] sm:$0xf]
        %v1096 = vunpack.c.l.bf16 %v1080
        %v1097 = vunpack.c.l.bf16 %v1081
        %v1098 = vunpack.c.l.bf16 %v1082
        %v1099 = vunpack.c.l.bf16 %v1083
        %v1100 = vunpack.c.l.bf16 %v1084
        %v1101 = vunpack.c.l.bf16 %v1085
        %v1102 = vunpack.c.l.bf16 %v1086
        %v1103 = vunpack.c.l.bf16 %v1087
        %v1104 = vunpack.c.l.bf16 %v1088
        %v1105 = vunpack.c.l.bf16 %v1089
        %v1106 = vunpack.c.l.bf16 %v1090
        %v1107 = vunpack.c.l.bf16 %v1091
        %v1108 = vunpack.c.l.bf16 %v1092
        %v1109 = vunpack.c.l.bf16 %v1093
        %v1110 = vunpack.c.l.bf16 %v1094
        %v1111 = vunpack.c.l.bf16 %v1095
        %v1113 = vsel %vm297, %v1096, 0
        %v1116 = vsel %vm297, %v1097, 0
        %v1119 = vsel %vm297, %v1098, 0
        %v1122 = vsel %vm297, %v1099, 0
        %v1125 = vsel %vm297, %v1100, 0
        %v1128 = vsel %vm297, %v1101, 0
        %v1131 = vsel %vm297, %v1102, 0
        %v1134 = vsel %vm297, %v1103, 0
        %v1137 = vsel %vm297, %v1104, 0
        %v1140 = vsel %vm297, %v1105, 0
        %v1143 = vsel %vm297, %v1106, 0
        %v1146 = vsel %vm297, %v1107, 0
        %v1149 = vsel %vm297, %v1108, 0
        %v1152 = vsel %vm297, %v1109, 0
        %v1155 = vsel %vm297, %v1110, 0
        %v1158 = vsel %vm297, %v1111, 0
        %1160 = vmatprep.subr.mxu0 0.0
        %1161 = vmatpush1.xpose.msra.mxu0 %v1113
        %1162 = vmatprep.subr.mxu0 0.0
        %1163 = vmatpush1.xpose.msra.mxu0 %v1116
        %1164 = vmatprep.subr.mxu0 0.0
        %1165 = vmatpush1.xpose.msra.mxu0 %v1119
        %1166 = vmatprep.subr.mxu0 0.0
        %1167 = vmatpush1.xpose.msra.mxu0 %v1122
        %1168 = vmatprep.subr.mxu0 0.0
        %1169 = vmatpush1.xpose.msra.mxu0 %v1125
        %1170 = vmatprep.subr.mxu0 0.0
        %1171 = vmatpush1.xpose.msra.mxu0 %v1128
        %1172 = vmatprep.subr.mxu0 0.0
        %1173 = vmatpush1.xpose.msra.mxu0 %v1131
        %1174 = vmatprep.subr.mxu0 0.0
        %1175 = vmatpush1.xpose.msra.mxu0 %v1134
        %1176 = vmatprep.subr.mxu0 0.0
        %1177 = vmatpush1.xpose.msra.mxu0 %v1137
        %1178 = vmatprep.subr.mxu0 0.0
        %1179 = vmatpush1.xpose.msra.mxu0 %v1140
        %1180 = vmatprep.subr.mxu0 0.0
        %1181 = vmatpush1.xpose.msra.mxu0 %v1143
        %1182 = vmatprep.subr.mxu0 0.0
        %1183 = vmatpush1.xpose.msra.mxu0 %v1146
        %1184 = vmatprep.subr.mxu0 0.0
        %1185 = vmatpush1.xpose.msra.mxu0 %v1149
        %1186 = vmatprep.subr.mxu0 0.0
        %1187 = vmatpush1.xpose.msra.mxu0 %v1152
        %1188 = vmatprep.subr.mxu0 0.0
        %1189 = vmatpush1.xpose.msra.mxu0 %v1155
        %1190 = vmatprep.subr.mxu0 0.0
        %1191 = vmatpush1.xpose.msra.mxu0 %v1158
        %1192 = vmatprep.subr.mxu0 0.0
        %1193 = vmatpush1.xpose.msra.mxu0 0.0
        %1194 = vmatprep.subr.mxu0 0.0
        %1195 = vmatpush1.xpose.msra.mxu0 0.0
        %1196 = vmatprep.subr.mxu0 0.0
        %1197 = vmatpush1.xpose.msra.mxu0 0.0
        %1198 = vmatprep.subr.mxu0 0.0
        %1199 = vmatpush1.xpose.msra.mxu0 0.0
        %1200 = vmatprep.subr.mxu0 0.0
        %1201 = vmatpush1.xpose.msra.mxu0 0.0
        %1202 = vmatprep.subr.mxu0 0.0
        %1203 = vmatpush1.xpose.msra.mxu0 0.0
        %1204 = vmatprep.subr.mxu0 0.0
        %1205 = vmatpush1.xpose.msra.mxu0 0.0
        %1206 = vmatprep.subr.mxu0 0.0
        %1207 = vmatpush1.xpose.msra.mxu0 0.0
        %1208 = vmatprep.subr.mxu0 0.0
        %1209 = vmatpush1.xpose.msra.mxu0 0.0
        %1210 = vmatprep.subr.mxu0 0.0
        %1211 = vmatpush1.xpose.msra.mxu0 0.0
        %1212 = vmatprep.subr.mxu0 0.0
        %1213 = vmatpush1.xpose.msra.mxu0 0.0
        %1214 = vmatprep.subr.mxu0 0.0
        %1215 = vmatpush1.xpose.msra.mxu0 0.0
        %1216 = vmatprep.subr.mxu0 0.0
        %1217 = vmatpush1.xpose.msra.mxu0 0.0
        %1218 = vmatprep.subr.mxu0 0.0
        %1219 = vmatpush1.xpose.msra.mxu0 0.0
        %1220 = vmatprep.subr.mxu0 0.0
        %1221 = vmatpush1.xpose.msra.mxu0 0.0
        %1222 = vmatprep.subr.mxu0 0.0
        %1223 = vmatpush1.xpose.msra.mxu0 0.0
        %1224 = vmatprep.mubr.f32.mxu0 0.0
        %1225 = vmatmul.mubr.f32.gmra.mrb[0].mxu0 %v299
        %v1226 = vpop.f32.mrb[0].mxu0
        %v1227 = vadd.f32 0.0, %v1226
        %v1228 = vpop.f32.mrb[0].mxu0
        %1229 = vmatprep.mubr.f32.mxu0 0.0
        %1230 = vmatmul.mubr.f32.gmra.mrb[0].mxu0 %v302
        %v1231 = vpop.f32.mrb[0].mxu0
        %v1232 = vadd.f32 0.0, %v1231
        %v1233 = vpop.f32.mrb[0].mxu0
        %1234 = vmatprep.mubr.f32.mxu0 0.0
        %1235 = vmatmul.mubr.f32.gmra.mrb[0].mxu0 %v305
        %v1236 = vpop.f32.mrb[0].mxu0
        %v1237 = vadd.f32 0.0, %v1236
        %v1238 = vpop.f32.mrb[0].mxu0
        %1239 = vdwg.mxu0
        %s1240 = scalar_lea.vmem %s222, 384 [#allocation2]
        %v1241 = vld [vmem:[%s1240] sm:$0xf]
        %v1242 = vld [vmem:[%s1240 + $0x4] sm:$0xf]
        %v1243 = vld [vmem:[%s1240 + $0x8] sm:$0xf]
        %v1244 = vld [vmem:[%s1240 + $0xc] sm:$0xf]
        %v1245 = vld [vmem:[%s1240 + $0x10] sm:$0xf]
        %v1246 = vld [vmem:[%s1240 + $0x14] sm:$0xf]
        %v1247 = vld [vmem:[%s1240 + $0x18] sm:$0xf]
        %v1248 = vld [vmem:[%s1240 + $0x1c] sm:$0xf]
        %v1249 = vld [vmem:[%s1240 + $0x20] sm:$0xf]
        %v1250 = vld [vmem:[%s1240 + $0x24] sm:$0xf]
        %v1251 = vld [vmem:[%s1240 + $0x28] sm:$0xf]
        %v1252 = vld [vmem:[%s1240 + $0x2c] sm:$0xf]
        %v1253 = vld [vmem:[%s1240 + $0x30] sm:$0xf]
        %v1254 = vld [vmem:[%s1240 + $0x34] sm:$0xf]
        %v1255 = vld [vmem:[%s1240 + $0x38] sm:$0xf]
        %v1256 = vld [vmem:[%s1240 + $0x3c] sm:$0xf]
        %v1257 = vunpack.c.l.bf16 %v1241
        %v1258 = vunpack.c.l.bf16 %v1242
        %v1259 = vunpack.c.l.bf16 %v1243
        %v1260 = vunpack.c.l.bf16 %v1244
        %v1261 = vunpack.c.l.bf16 %v1245
        %v1262 = vunpack.c.l.bf16 %v1246
        %v1263 = vunpack.c.l.bf16 %v1247
        %v1264 = vunpack.c.l.bf16 %v1248
        %v1265 = vunpack.c.l.bf16 %v1249
        %v1266 = vunpack.c.l.bf16 %v1250
        %v1267 = vunpack.c.l.bf16 %v1251
        %v1268 = vunpack.c.l.bf16 %v1252
        %v1269 = vunpack.c.l.bf16 %v1253
        %v1270 = vunpack.c.l.bf16 %v1254
        %v1271 = vunpack.c.l.bf16 %v1255
        %v1272 = vunpack.c.l.bf16 %v1256
        %v1274 = vsel %vm297, %v1257, 0
        %v1277 = vsel %vm297, %v1258, 0
        %v1280 = vsel %vm297, %v1259, 0
        %v1283 = vsel %vm297, %v1260, 0
        %v1286 = vsel %vm297, %v1261, 0
        %v1289 = vsel %vm297, %v1262, 0
        %v1292 = vsel %vm297, %v1263, 0
        %v1295 = vsel %vm297, %v1264, 0
        %v1298 = vsel %vm297, %v1265, 0
        %v1301 = vsel %vm297, %v1266, 0
        %v1304 = vsel %vm297, %v1267, 0
        %v1307 = vsel %vm297, %v1268, 0
        %v1310 = vsel %vm297, %v1269, 0
        %v1313 = vsel %vm297, %v1270, 0
        %v1316 = vsel %vm297, %v1271, 0
        %v1319 = vsel %vm297, %v1272, 0
        %1321 = vmatprep.subr.mxu0 0.0
        %1322 = vmatpush1.xpose.msra.mxu0 %v1274
        %1323 = vmatprep.subr.mxu0 0.0
        %1324 = vmatpush1.xpose.msra.mxu0 %v1277
        %1325 = vmatprep.subr.mxu0 0.0
        %1326 = vmatpush1.xpose.msra.mxu0 %v1280
        %1327 = vmatprep.subr.mxu0 0.0
        %1328 = vmatpush1.xpose.msra.mxu0 %v1283
        %1329 = vmatprep.subr.mxu0 0.0
        %1330 = vmatpush1.xpose.msra.mxu0 %v1286
        %1331 = vmatprep.subr.mxu0 0.0
        %1332 = vmatpush1.xpose.msra.mxu0 %v1289
        %1333 = vmatprep.subr.mxu0 0.0
        %1334 = vmatpush1.xpose.msra.mxu0 %v1292
        %1335 = vmatprep.subr.mxu0 0.0
        %1336 = vmatpush1.xpose.msra.mxu0 %v1295
        %1337 = vmatprep.subr.mxu0 0.0
        %1338 = vmatpush1.xpose.msra.mxu0 %v1298
        %1339 = vmatprep.subr.mxu0 0.0
        %1340 = vmatpush1.xpose.msra.mxu0 %v1301
        %1341 = vmatprep.subr.mxu0 0.0
        %1342 = vmatpush1.xpose.msra.mxu0 %v1304
        %1343 = vmatprep.subr.mxu0 0.0
        %1344 = vmatpush1.xpose.msra.mxu0 %v1307
        %1345 = vmatprep.subr.mxu0 0.0
        %1346 = vmatpush1.xpose.msra.mxu0 %v1310
        %1347 = vmatprep.subr.mxu0 0.0
        %1348 = vmatpush1.xpose.msra.mxu0 %v1313
        %1349 = vmatprep.subr.mxu0 0.0
        %1350 = vmatpush1.xpose.msra.mxu0 %v1316
        %1351 = vmatprep.subr.mxu0 0.0
        %1352 = vmatpush1.xpose.msra.mxu0 %v1319
        %1353 = vmatprep.subr.mxu0 0.0
        %1354 = vmatpush1.xpose.msra.mxu0 0.0
        %1355 = vmatprep.subr.mxu0 0.0
        %1356 = vmatpush1.xpose.msra.mxu0 0.0
        %1357 = vmatprep.subr.mxu0 0.0
        %1358 = vmatpush1.xpose.msra.mxu0 0.0
        %1359 = vmatprep.subr.mxu0 0.0
        %1360 = vmatpush1.xpose.msra.mxu0 0.0
        %1361 = vmatprep.subr.mxu0 0.0
        %1362 = vmatpush1.xpose.msra.mxu0 0.0
        %1363 = vmatprep.subr.mxu0 0.0
        %1364 = vmatpush1.xpose.msra.mxu0 0.0
        %1365 = vmatprep.subr.mxu0 0.0
        %1366 = vmatpush1.xpose.msra.mxu0 0.0
        %1367 = vmatprep.subr.mxu0 0.0
        %1368 = vmatpush1.xpose.msra.mxu0 0.0
        %1369 = vmatprep.subr.mxu0 0.0
        %1370 = vmatpush1.xpose.msra.mxu0 0.0
        %1371 = vmatprep.subr.mxu0 0.0
        %1372 = vmatpush1.xpose.msra.mxu0 0.0
        %1373 = vmatprep.subr.mxu0 0.0
        %1374 = vmatpush1.xpose.msra.mxu0 0.0
        %1375 = vmatprep.subr.mxu0 0.0
        %1376 = vmatpush1.xpose.msra.mxu0 0.0
        %1377 = vmatprep.subr.mxu0 0.0
        %1378 = vmatpush1.xpose.msra.mxu0 0.0
        %1379 = vmatprep.subr.mxu0 0.0
        %1380 = vmatpush1.xpose.msra.mxu0 0.0
        %1381 = vmatprep.subr.mxu0 0.0
        %1382 = vmatpush1.xpose.msra.mxu0 0.0
        %1383 = vmatprep.subr.mxu0 0.0
        %1384 = vmatpush1.xpose.msra.mxu0 0.0
        %1385 = vmatprep.mubr.f32.mxu0 0.0
        %1386 = vmatmul.mubr.f32.gmra.mrb[0].mxu0 %v299
        %v1387 = vpop.f32.mrb[0].mxu0
        %v1388 = vadd.f32 0.0, %v1387
        %v1389 = vpop.f32.mrb[0].mxu0
        %1390 = vmatprep.mubr.f32.mxu0 0.0
        %1391 = vmatmul.mubr.f32.gmra.mrb[0].mxu0 %v302
        %v1392 = vpop.f32.mrb[0].mxu0
        %v1393 = vadd.f32 0.0, %v1392
        %v1394 = vpop.f32.mrb[0].mxu0
        %1395 = vmatprep.mubr.f32.mxu0 0.0
        %1396 = vmatmul.mubr.f32.gmra.mrb[0].mxu0 %v305
        %v1397 = vpop.f32.mrb[0].mxu0
        %v1398 = vadd.f32 0.0, %v1397
        %v1399 = vpop.f32.mrb[0].mxu0
        %1400 = vdwg.mxu0
        %s1401 = scalar_lea.vmem %s222, 448 [#allocation2]
        %v1402 = vld [vmem:[%s1401] sm:$0xf]
        %v1403 = vld [vmem:[%s1401 + $0x4] sm:$0xf]
        %v1404 = vld [vmem:[%s1401 + $0x8] sm:$0xf]
        %v1405 = vld [vmem:[%s1401 + $0xc] sm:$0xf]
        %v1406 = vld [vmem:[%s1401 + $0x10] sm:$0xf]
        %v1407 = vld [vmem:[%s1401 + $0x14] sm:$0xf]
        %v1408 = vld [vmem:[%s1401 + $0x18] sm:$0xf]
        %v1409 = vld [vmem:[%s1401 + $0x1c] sm:$0xf]
        %v1410 = vld [vmem:[%s1401 + $0x20] sm:$0xf]
        %v1411 = vld [vmem:[%s1401 + $0x24] sm:$0xf]
        %v1412 = vld [vmem:[%s1401 + $0x28] sm:$0xf]
        %v1413 = vld [vmem:[%s1401 + $0x2c] sm:$0xf]
        %v1414 = vld [vmem:[%s1401 + $0x30] sm:$0xf]
        %v1415 = vld [vmem:[%s1401 + $0x34] sm:$0xf]
        %v1416 = vld [vmem:[%s1401 + $0x38] sm:$0xf]
        %v1417 = vld [vmem:[%s1401 + $0x3c] sm:$0xf]
        %v1418 = vunpack.c.l.bf16 %v1402
        %v1419 = vunpack.c.l.bf16 %v1403
        %v1420 = vunpack.c.l.bf16 %v1404
        %v1421 = vunpack.c.l.bf16 %v1405
        %v1422 = vunpack.c.l.bf16 %v1406
        %v1423 = vunpack.c.l.bf16 %v1407
        %v1424 = vunpack.c.l.bf16 %v1408
        %v1425 = vunpack.c.l.bf16 %v1409
        %v1426 = vunpack.c.l.bf16 %v1410
        %v1427 = vunpack.c.l.bf16 %v1411
        %v1428 = vunpack.c.l.bf16 %v1412
        %v1429 = vunpack.c.l.bf16 %v1413
        %v1430 = vunpack.c.l.bf16 %v1414
        %v1431 = vunpack.c.l.bf16 %v1415
        %v1432 = vunpack.c.l.bf16 %v1416
        %v1433 = vunpack.c.l.bf16 %v1417
        %v1435 = vsel %vm297, %v1418, 0
        %v1438 = vsel %vm297, %v1419, 0
        %v1441 = vsel %vm297, %v1420, 0
        %v1444 = vsel %vm297, %v1421, 0
        %v1447 = vsel %vm297, %v1422, 0
        %v1450 = vsel %vm297, %v1423, 0
        %v1453 = vsel %vm297, %v1424, 0
        %v1456 = vsel %vm297, %v1425, 0
        %v1459 = vsel %vm297, %v1426, 0
        %v1462 = vsel %vm297, %v1427, 0
        %v1465 = vsel %vm297, %v1428, 0
        %v1468 = vsel %vm297, %v1429, 0
        %v1471 = vsel %vm297, %v1430, 0
        %v1474 = vsel %vm297, %v1431, 0
        %v1477 = vsel %vm297, %v1432, 0
        %v1480 = vsel %vm297, %v1433, 0
        %1482 = vmatprep.subr.mxu0 0.0
        %1483 = vmatpush1.xpose.msra.mxu0 %v1435
        %1484 = vmatprep.subr.mxu0 0.0
        %1485 = vmatpush1.xpose.msra.mxu0 %v1438
        %1486 = vmatprep.subr.mxu0 0.0
        %1487 = vmatpush1.xpose.msra.mxu0 %v1441
        %1488 = vmatprep.subr.mxu0 0.0
        %1489 = vmatpush1.xpose.msra.mxu0 %v1444
        %1490 = vmatprep.subr.mxu0 0.0
        %1491 = vmatpush1.xpose.msra.mxu0 %v1447
        %1492 = vmatprep.subr.mxu0 0.0
        %1493 = vmatpush1.xpose.msra.mxu0 %v1450
        %1494 = vmatprep.subr.mxu0 0.0
        %1495 = vmatpush1.xpose.msra.mxu0 %v1453
        %1496 = vmatprep.subr.mxu0 0.0
        %1497 = vmatpush1.xpose.msra.mxu0 %v1456
        %1498 = vmatprep.subr.mxu0 0.0
        %1499 = vmatpush1.xpose.msra.mxu0 %v1459
        %1500 = vmatprep.subr.mxu0 0.0
        %1501 = vmatpush1.xpose.msra.mxu0 %v1462
        %1502 = vmatprep.subr.mxu0 0.0
        %1503 = vmatpush1.xpose.msra.mxu0 %v1465
        %1504 = vmatprep.subr.mxu0 0.0
        %1505 = vmatpush1.xpose.msra.mxu0 %v1468
        %1506 = vmatprep.subr.mxu0 0.0
        %1507 = vmatpush1.xpose.msra.mxu0 %v1471
        %1508 = vmatprep.subr.mxu0 0.0
        %1509 = vmatpush1.xpose.msra.mxu0 %v1474
        %1510 = vmatprep.subr.mxu0 0.0
        %1511 = vmatpush1.xpose.msra.mxu0 %v1477
        %1512 = vmatprep.subr.mxu0 0.0
        %1513 = vmatpush1.xpose.msra.mxu0 %v1480
        %1514 = vmatprep.subr.mxu0 0.0
        %1515 = vmatpush1.xpose.msra.mxu0 0.0
        %1516 = vmatprep.subr.mxu0 0.0
        %1517 = vmatpush1.xpose.msra.mxu0 0.0
        %1518 = vmatprep.subr.mxu0 0.0
        %1519 = vmatpush1.xpose.msra.mxu0 0.0
        %1520 = vmatprep.subr.mxu0 0.0
        %1521 = vmatpush1.xpose.msra.mxu0 0.0
        %1522 = vmatprep.subr.mxu0 0.0
        %1523 = vmatpush1.xpose.msra.mxu0 0.0
        %1524 = vmatprep.subr.mxu0 0.0
        %1525 = vmatpush1.xpose.msra.mxu0 0.0
        %1526 = vmatprep.subr.mxu0 0.0
        %1527 = vmatpush1.xpose.msra.mxu0 0.0
        %1528 = vmatprep.subr.mxu0 0.0
        %1529 = vmatpush1.xpose.msra.mxu0 0.0
        %1530 = vmatprep.subr.mxu0 0.0
        %1531 = vmatpush1.xpose.msra.mxu0 0.0
        %1532 = vmatprep.subr.mxu0 0.0
        %1533 = vmatpush1.xpose.msra.mxu0 0.0
        %1534 = vmatprep.subr.mxu0 0.0
        %1535 = vmatpush1.xpose.msra.mxu0 0.0
        %1536 = vmatprep.subr.mxu0 0.0
        %1537 = vmatpush1.xpose.msra.mxu0 0.0
        %1538 = vmatprep.subr.mxu0 0.0
        %1539 = vmatpush1.xpose.msra.mxu0 0.0
        %1540 = vmatprep.subr.mxu0 0.0
        %1541 = vmatpush1.xpose.msra.mxu0 0.0
        %1542 = vmatprep.subr.mxu0 0.0
        %1543 = vmatpush1.xpose.msra.mxu0 0.0
        %1544 = vmatprep.subr.mxu0 0.0
        %1545 = vmatpush1.xpose.msra.mxu0 0.0
        %1546 = vmatprep.mubr.f32.mxu0 0.0
        %1547 = vmatmul.mubr.f32.gmra.mrb[0].mxu0 %v299
        %v1548 = vpop.f32.mrb[0].mxu0
        %v1549 = vadd.f32 0.0, %v1548
        %v1550 = vpop.f32.mrb[0].mxu0
        %1551 = vmatprep.mubr.f32.mxu0 0.0
        %1552 = vmatmul.mubr.f32.gmra.mrb[0].mxu0 %v302
        %v1553 = vpop.f32.mrb[0].mxu0
        %v1554 = vadd.f32 0.0, %v1553
        %v1555 = vpop.f32.mrb[0].mxu0
        %1556 = vmatprep.mubr.f32.mxu0 0.0
        %1557 = vmatmul.mubr.f32.gmra.mrb[0].mxu0 %v305
        %v1558 = vpop.f32.mrb[0].mxu0
        %v1559 = vadd.f32 0.0, %v1558
        %v1560 = vpop.f32.mrb[0].mxu0
        %1561 = vdwg.mxu0
        %vm1562 = vcmp.ge.f32.partialorder %v422, 0.0
        %vm1563 = vcmp.ge.f32.partialorder %v427, 0.0
        %vm1564 = vcmp.ge.f32.partialorder %v432, 0.0
        %vm1565 = vcmp.ge.f32.partialorder %v583, 0.0
        %vm1566 = vcmp.ge.f32.partialorder %v588, 0.0
        %vm1567 = vcmp.ge.f32.partialorder %v593, 0.0
        %vm1568 = vcmp.ge.f32.partialorder %v744, 0.0
        %vm1569 = vcmp.ge.f32.partialorder %v749, 0.0
        %vm1570 = vcmp.ge.f32.partialorder %v754, 0.0
        %vm1571 = vcmp.ge.f32.partialorder %v905, 0.0
        %vm1572 = vcmp.ge.f32.partialorder %v910, 0.0
        %vm1573 = vcmp.ge.f32.partialorder %v915, 0.0
        %vm1574 = vcmp.ge.f32.partialorder %v1066, 0.0
        %vm1575 = vcmp.ge.f32.partialorder %v1071, 0.0
        %vm1576 = vcmp.ge.f32.partialorder %v1076, 0.0
        %vm1577 = vcmp.ge.f32.partialorder %v1227, 0.0
        %vm1578 = vcmp.ge.f32.partialorder %v1232, 0.0
        %vm1579 = vcmp.ge.f32.partialorder %v1237, 0.0
        %vm1580 = vcmp.ge.f32.partialorder %v1388, 0.0
        %vm1581 = vcmp.ge.f32.partialorder %v1393, 0.0
        %vm1582 = vcmp.ge.f32.partialorder %v1398, 0.0
        %vm1583 = vcmp.ge.f32.partialorder %v1549, 0.0
        %vm1584 = vcmp.ge.f32.partialorder %v1554, 0.0
        %vm1585 = vcmp.ge.f32.partialorder %v1559, 0.0
        %v1586 = vmul.f32 %v422, 0.1
        %v1587 = vmul.f32 %v427, 0.1
        %v1588 = vmul.f32 %v432, 0.1
        %v1589 = vmul.f32 %v583, 0.1
        %v1590 = vmul.f32 %v588, 0.1
        %v1591 = vmul.f32 %v593, 0.1
        %v1592 = vmul.f32 %v744, 0.1
        %v1593 = vmul.f32 %v749, 0.1
        %v1594 = vmul.f32 %v754, 0.1
        %v1595 = vmul.f32 %v905, 0.1
        %v1596 = vmul.f32 %v910, 0.1
        %v1597 = vmul.f32 %v915, 0.1
        %v1598 = vmul.f32 %v1066, 0.1
        %v1599 = vmul.f32 %v1071, 0.1
        %v1600 = vmul.f32 %v1076, 0.1
        %v1601 = vmul.f32 %v1227, 0.1
        %v1602 = vmul.f32 %v1232, 0.1
        %v1603 = vmul.f32 %v1237, 0.1
        %v1604 = vmul.f32 %v1388, 0.1
        %v1605 = vmul.f32 %v1393, 0.1
        %v1606 = vmul.f32 %v1398, 0.1
        %v1607 = vmul.f32 %v1549, 0.1
        %v1608 = vmul.f32 %v1554, 0.1
        %v1609 = vmul.f32 %v1559, 0.1
        %v1610 = vsel %vm1562, %v422, %v1586
        %v1611 = vsel %vm1563, %v427, %v1587
        %v1612 = vsel %vm1564, %v432, %v1588
        %v1613 = vsel %vm1565, %v583, %v1589
        %v1614 = vsel %vm1566, %v588, %v1590
        %v1615 = vsel %vm1567, %v593, %v1591
        %v1616 = vsel %vm1568, %v744, %v1592
        %v1617 = vsel %vm1569, %v749, %v1593
        %v1618 = vsel %vm1570, %v754, %v1594
        %v1619 = vsel %vm1571, %v905, %v1595
        %v1620 = vsel %vm1572, %v910, %v1596
        %v1621 = vsel %vm1573, %v915, %v1597
        %v1622 = vsel %vm1574, %v1066, %v1598
        %v1623 = vsel %vm1575, %v1071, %v1599
        %v1624 = vsel %vm1576, %v1076, %v1600
        %v1625 = vsel %vm1577, %v1227, %v1601
        %v1626 = vsel %vm1578, %v1232, %v1602
        %v1627 = vsel %vm1579, %v1237, %v1603
        %v1628 = vsel %vm1580, %v1388, %v1604
        %v1629 = vsel %vm1581, %v1393, %v1605
        %v1630 = vsel %vm1582, %v1398, %v1606
        %v1631 = vsel %vm1583, %v1549, %v1607
        %v1632 = vsel %vm1584, %v1554, %v1608
        %v1633 = vsel %vm1585, %v1559, %v1609
        %v1634 = vpack.c.bf16 %v1611, %v1610
        %v1635 = vpack.c.bf16 %v1613, %v1612
        %v1636 = vpack.c.bf16 %v1615, %v1614
        %v1637 = vpack.c.bf16 %v1617, %v1616
        %v1638 = vpack.c.bf16 %v1619, %v1618
        %v1639 = vpack.c.bf16 %v1621, %v1620
        %v1640 = vpack.c.bf16 %v1623, %v1622
        %v1641 = vpack.c.bf16 %v1625, %v1624
        %v1642 = vpack.c.bf16 %v1627, %v1626
        %v1643 = vpack.c.bf16 %v1629, %v1628
        %v1644 = vpack.c.bf16 %v1631, %v1630
        %v1645 = vpack.c.bf16 %v1633, %v1632
        %v1646 = vld [vmem:[#allocation7] sm:$0xf]
        %v1647 = vld [vmem:[#allocation7 + $0x4] sm:$0xf]
        %v1648 = vld [vmem:[#allocation7 + $0x8] sm:$0xf]
        %v1649 = vld [vmem:[#allocation7 + $0xc] sm:$0xf]
        %v1650 = vld [vmem:[#allocation7 + $0x10] sm:$0xf]
        %v1651 = vld [vmem:[#allocation7 + $0x14] sm:$0xf]
        %v1652 = vld [vmem:[#allocation7 + $0x18] sm:$0xf]
        %v1653 = vld [vmem:[#allocation7 + $0x1c] sm:$0xf]
        %v1654 = vld [vmem:[#allocation7 + $0x20] sm:$0xf]
        %v1655 = vld [vmem:[#allocation7 + $0x24] sm:$0xf]
        %v1656 = vld [vmem:[#allocation7 + $0x28] sm:$0xf]
        %v1657 = vld [vmem:[#allocation7 + $0x2c] sm:$0xf]
        %v1658 = vld [vmem:[#allocation7 + $0x30] sm:$0xf]
        %v1659 = vld [vmem:[#allocation7 + $0x34] sm:$0xf]
        %v1660 = vld [vmem:[#allocation7 + $0x38] sm:$0xf]
        %v1661 = vld [vmem:[#allocation7 + $0x3c] sm:$0xf]
        %v1662 = vld [vmem:[#allocation8] sm:$0x1]
        %v1664 = vlaneseq
        %v1665 = vshrl.u32 %v1664, 7
        %v1666 = vsub.s32 0, %v1665
        %v1667 = vrot.slane %v1662, %v1666
        %v1685 = vunpack.c.l.b16 %v1646
        %v1686 = vunpack.c.l.b16 %v1647
        %v1687 = vunpack.c.l.b16 %v1648
        %v1688 = vunpack.c.l.b16 %v1649
        %v1689 = vunpack.c.l.b16 %v1650
        %v1690 = vunpack.c.l.b16 %v1651
        %v1691 = vunpack.c.l.b16 %v1652
        %v1692 = vunpack.c.l.b16 %v1653
        %v1693 = vunpack.c.l.b16 %v1654
        %v1694 = vunpack.c.l.b16 %v1655
        %v1695 = vunpack.c.l.b16 %v1656
        %v1696 = vunpack.c.l.b16 %v1657
        %v1697 = vunpack.c.l.b16 %v1658
        %v1698 = vunpack.c.l.b16 %v1659
        %v1699 = vunpack.c.l.b16 %v1660
        %v1700 = vunpack.c.l.b16 %v1661
        %v1701 = vpack.c.b16 %v1686, %v1685
        %v1702 = vpack.c.b16 %v1688, %v1687
        %v1703 = vpack.c.b16 %v1690, %v1689
        %v1704 = vpack.c.b16 %v1692, %v1691
        %v1705 = vpack.c.b16 %v1694, %v1693
        %v1706 = vpack.c.b16 %v1696, %v1695
        %v1707 = vpack.c.b16 %v1698, %v1697
        %v1708 = vpack.c.b16 %v1700, %v1699
        %1717 = vmatprep.subr.bf16.mxu0 0
        %1718 = vmatpush1.bf16.msra.mxu0 %v1701
        %1719 = vmatprep.subr.bf16.mxu0 0
        %1720 = vmatpush1.bf16.msra.mxu0 %v1702
        %1721 = vmatprep.subr.bf16.mxu0 0
        %1722 = vmatpush1.bf16.msra.mxu0 %v1703
        %1723 = vmatprep.subr.bf16.mxu0 0
        %1724 = vmatpush1.bf16.msra.mxu0 %v1704
        %1725 = vmatprep.subr.bf16.mxu0 0
        %1726 = vmatpush1.bf16.msra.mxu0 %v1705
        %1727 = vmatprep.subr.bf16.mxu0 0
        %1728 = vmatpush1.bf16.msra.mxu0 %v1706
        %1729 = vmatprep.subr.bf16.mxu0 0
        %1730 = vmatpush1.bf16.msra.mxu0 %v1707
        %1731 = vmatprep.subr.bf16.mxu0 0
        %1732 = vmatpush1.bf16.msra.mxu0 %v1708
        %1733 = vmatprep.subr.bf16.mxu0 0
        %1734 = vmatpush1.bf16.msra.mxu0 0
        %1735 = vmatprep.subr.bf16.mxu0 0
        %1736 = vmatpush1.bf16.msra.mxu0 0
        %1737 = vmatprep.subr.bf16.mxu0 0
        %1738 = vmatpush1.bf16.msra.mxu0 0
        %1739 = vmatprep.subr.bf16.mxu0 0
        %1740 = vmatpush1.bf16.msra.mxu0 0
        %1741 = vmatprep.subr.bf16.mxu0 0
        %1742 = vmatpush1.bf16.msra.mxu0 0
        %1743 = vmatprep.subr.bf16.mxu0 0
        %1744 = vmatpush1.bf16.msra.mxu0 0
        %1745 = vmatprep.subr.bf16.mxu0 0
        %1746 = vmatpush1.bf16.msra.mxu0 0
        %1747 = vmatprep.subr.bf16.mxu0 0
        %1748 = vmatpush1.bf16.msra.mxu0 0
        %1749 = vmatprep.mubr.bf16.mxu0 0
        %1750 = vmatmul.mubr.bf16.gmra.mrb[0].mxu0 %v1634
        %v1751 = vpop.f32.mrb[0].mxu0
        %v1752 = vadd.f32 %v1667, %v1751
        %v1753 = vpop.f32.mrb[0].mxu0
        %v1754 = vpop.f32.mrb[0].mxu0
        %v1755 = vadd.f32 %v1667, %v1754
        %v1756 = vpop.f32.mrb[0].mxu0
        %1757 = vmatprep.mubr.bf16.mxu0 0
        %1758 = vmatmul.mubr.bf16.gmra.mrb[0].mxu0 %v1635
        %v1759 = vpop.f32.mrb[0].mxu0
        %v1760 = vadd.f32 %v1667, %v1759
        %v1761 = vpop.f32.mrb[0].mxu0
        %v1762 = vpop.f32.mrb[0].mxu0
        %v1763 = vadd.f32 %v1667, %v1762
        %v1764 = vpop.f32.mrb[0].mxu0
        %1765 = vmatprep.mubr.bf16.mxu0 0
        %1766 = vmatmul.mubr.bf16.gmra.mrb[0].mxu0 %v1636
        %v1767 = vpop.f32.mrb[0].mxu0
        %v1768 = vadd.f32 %v1667, %v1767
        %v1769 = vpop.f32.mrb[0].mxu0
        %v1770 = vpop.f32.mrb[0].mxu0
        %v1771 = vadd.f32 %v1667, %v1770
        %v1772 = vpop.f32.mrb[0].mxu0
        %1773 = vmatprep.mubr.bf16.mxu0 0
        %1774 = vmatmul.mubr.bf16.gmra.mrb[0].mxu0 %v1637
        %v1775 = vpop.f32.mrb[0].mxu0
        %v1776 = vadd.f32 %v1667, %v1775
        %v1777 = vpop.f32.mrb[0].mxu0
        %v1778 = vpop.f32.mrb[0].mxu0
        %v1779 = vadd.f32 %v1667, %v1778
        %v1780 = vpop.f32.mrb[0].mxu0
        %1781 = vmatprep.mubr.bf16.mxu0 0
        %1782 = vmatmul.mubr.bf16.gmra.mrb[0].mxu0 %v1638
        %v1783 = vpop.f32.mrb[0].mxu0
        %v1784 = vadd.f32 %v1667, %v1783
        %v1785 = vpop.f32.mrb[0].mxu0
        %v1786 = vpop.f32.mrb[0].mxu0
        %v1787 = vadd.f32 %v1667, %v1786
        %v1788 = vpop.f32.mrb[0].mxu0
        %1789 = vmatprep.mubr.bf16.mxu0 0
        %1790 = vmatmul.mubr.bf16.gmra.mrb[0].mxu0 %v1639
        %v1791 = vpop.f32.mrb[0].mxu0
        %v1792 = vadd.f32 %v1667, %v1791
        %v1793 = vpop.f32.mrb[0].mxu0
        %v1794 = vpop.f32.mrb[0].mxu0
        %v1795 = vadd.f32 %v1667, %v1794
        %v1796 = vpop.f32.mrb[0].mxu0
        %1797 = vmatprep.mubr.bf16.mxu0 0
        %1798 = vmatmul.mubr.bf16.gmra.mrb[0].mxu0 %v1640
        %v1799 = vpop.f32.mrb[0].mxu0
        %v1800 = vadd.f32 %v1667, %v1799
        %v1801 = vpop.f32.mrb[0].mxu0
        %v1802 = vpop.f32.mrb[0].mxu0
        %v1803 = vadd.f32 %v1667, %v1802
        %v1804 = vpop.f32.mrb[0].mxu0
        %1805 = vmatprep.mubr.bf16.mxu0 0
        %1806 = vmatmul.mubr.bf16.gmra.mrb[0].mxu0 %v1641
        %v1807 = vpop.f32.mrb[0].mxu0
        %v1808 = vadd.f32 %v1667, %v1807
        %v1809 = vpop.f32.mrb[0].mxu0
        %v1810 = vpop.f32.mrb[0].mxu0
        %v1811 = vadd.f32 %v1667, %v1810
        %v1812 = vpop.f32.mrb[0].mxu0
        %1813 = vmatprep.mubr.bf16.mxu0 0
        %1814 = vmatmul.mubr.bf16.gmra.mrb[0].mxu0 %v1642
        %v1815 = vpop.f32.mrb[0].mxu0
        %v1816 = vadd.f32 %v1667, %v1815
        %v1817 = vpop.f32.mrb[0].mxu0
        %v1818 = vpop.f32.mrb[0].mxu0
        %v1819 = vadd.f32 %v1667, %v1818
        %v1820 = vpop.f32.mrb[0].mxu0
        %1821 = vmatprep.mubr.bf16.mxu0 0
        %1822 = vmatmul.mubr.bf16.gmra.mrb[0].mxu0 %v1643
        %v1823 = vpop.f32.mrb[0].mxu0
        %v1824 = vadd.f32 %v1667, %v1823
        %v1825 = vpop.f32.mrb[0].mxu0
        %v1826 = vpop.f32.mrb[0].mxu0
        %v1827 = vadd.f32 %v1667, %v1826
        %v1828 = vpop.f32.mrb[0].mxu0
        %1829 = vmatprep.mubr.bf16.mxu0 0
        %1830 = vmatmul.mubr.bf16.gmra.mrb[0].mxu0 %v1644
        %v1831 = vpop.f32.mrb[0].mxu0
        %v1832 = vadd.f32 %v1667, %v1831
        %v1833 = vpop.f32.mrb[0].mxu0
        %v1834 = vpop.f32.mrb[0].mxu0
        %v1835 = vadd.f32 %v1667, %v1834
        %v1836 = vpop.f32.mrb[0].mxu0
        %1837 = vmatprep.mubr.bf16.mxu0 0
        %1838 = vmatmul.mubr.bf16.gmra.mrb[0].mxu0 %v1645
        %v1839 = vpop.f32.mrb[0].mxu0
        %v1840 = vadd.f32 %v1667, %v1839
        %v1841 = vpop.f32.mrb[0].mxu0
        %v1842 = vpop.f32.mrb[0].mxu0
        %v1843 = vadd.f32 %v1667, %v1842
        %v1844 = vpop.f32.mrb[0].mxu0
        %1845 = vdwg.mxu0
        %1846 = vst [vmem:[%s258] sm:$0xff] %v1752
        %1847 = vst [vmem:[%s258 + $0x8] sm:$0xff] %v1755
        %1848 = vst [vmem:[%s258 + $0x10] sm:$0xff] %v1760
        %1849 = vst [vmem:[%s258 + $0x18] sm:$0xff] %v1763
        %1850 = vst [vmem:[%s258 + $0x20] sm:$0xff] %v1768
        %1851 = vst [vmem:[%s258 + $0x28] sm:$0xff] %v1771
        %1852 = vst [vmem:[%s258 + $0x30] sm:$0xff] %v1776
        %1853 = vst [vmem:[%s258 + $0x38] sm:$0xff] %v1779
        %1854 = vst [vmem:[%s258 + $0x40] sm:$0xff] %v1784
        %1855 = vst [vmem:[%s258 + $0x48] sm:$0xff] %v1787
        %1856 = vst [vmem:[%s258 + $0x50] sm:$0xff] %v1792
        %1857 = vst [vmem:[%s258 + $0x58] sm:$0xff] %v1795
        %1858 = vst [vmem:[%s258 + $0x60] sm:$0xff] %v1800
        %1859 = vst [vmem:[%s258 + $0x68] sm:$0xff] %v1803
        %1860 = vst [vmem:[%s258 + $0x70] sm:$0xff] %v1808
        %1861 = vst [vmem:[%s258 + $0x78] sm:$0xff] %v1811
        %1862 = vst [vmem:[%s258 + $0x80] sm:$0xff] %v1816
        %1863 = vst [vmem:[%s258 + $0x88] sm:$0xff] %v1819
        %1864 = vst [vmem:[%s258 + $0x90] sm:$0xff] %v1824
        %1865 = vst [vmem:[%s258 + $0x98] sm:$0xff] %v1827
        %1866 = vst [vmem:[%s258 + $0xa0] sm:$0xff] %v1832
        %1867 = vst [vmem:[%s258 + $0xa8] sm:$0xff] %v1835
        %1868 = vst [vmem:[%s258 + $0xb0] sm:$0xff] %v1840
        %1869 = vst [vmem:[%s258 + $0xb8] sm:$0xff] %v1843
        %s1870 = sand.u32 %s120, 1
        %s1871 = scalar_lea.sflag [#allocation4], %s1870
        %s1872 = sand.u32 %s120, 1
        %s1873 = smul.addr %s1872, 192
        %s1874 = scalar_lea.vmem [#allocation10], %s1873
        // Predicated region
        $region53: #{tpu_custom_call.1} parent=35 // pred_check
          %p1875 = pneg %p130
        $region54: #{tpu_custom_call.1} parent=35 // pred_check_branch
          %1877 = sbr.rel (%p1875) target = $region56
        $region55: #{tpu_custom_call.1} parent=35 // pred_region
          %s1878 = smul.u32 24, %s23
          %s1880 = ssub.s32 3072, 3072
          %1881 = vsyncadd %s1871, %s1880
          %s1882 = smul.addr %s1878, 128
          %s1883 = scalar_lea.hbm %s4, %s1882
          %s1884 = sshll.u32 %s1874, 4
          %s1885 = int_to_ptr.vmem [resolvable:$true] %s1884
          %1890 = dma.vmem_to_hbm [thread:$0]  %s1885, 3072, %s1883, %s1871, 128, 128, 8
        $region56: #{tpu_custom_call.1} parent=35 // pred_fallthru
          _
      $region36: #{tpu_custom_call.1} parent=5 // pred_fallthru
        _
      %p1891 = scmp.le.s32.totalorder 2, %s18
      // Predicated region
      $region57: #{tpu_custom_call.1} parent=5 // pred_check
        %p1892 = pneg %p1891
      $region58: #{tpu_custom_call.1} parent=5 // pred_check_branch
        %1894 = sbr.rel (%p1892) target = $region60
      $region59: #{tpu_custom_call.1} parent=5 // pred_region
        %s1895 = ssub.s32 %s18, 2
        // Predicated region
        $region61: #{tpu_custom_call.1} parent=59 // pred_check
          %p1896 = pneg %p136
        $region62: #{tpu_custom_call.1} parent=59 // pred_check_branch
          %1898 = sbr.rel (%p1896) target = $region64
        $region63: #{tpu_custom_call.1} parent=59 // pred_region
          %s1899 = sand.u32 %s121, 1
          %s1900 = scalar_lea.sflag [#allocation4], %s1899
          %s1901 = sand.u32 %s121, 1
          %s1902 = smul.addr %s1901, 192
          %s1903 = scalar_lea.vmem [#allocation10], %s1902
          %1904 = dma.done %s1900, 3072
        $region64: #{tpu_custom_call.1} parent=59 // pred_fallthru
          _
      $region60: #{tpu_custom_call.1} parent=5 // pred_fallthru
        _
    $region6: #{tpu_custom_call.1} parent=1 // loop_footer
      %s22 = sadd.s32 1, %s18
    $region7: #{tpu_custom_call.1} parent=1 // loop_footer_branch
      %17 = sbr.rel target = $region3
    $region8: #{tpu_custom_call.1} parent=1 // loop_exit
      _
    %1905 = vsyncpa [#allocation3], 1
    %s1906 = scalar_lea.sflag [#allocation3], 1
    %1907 = vsyncpa %s1906, 1
    %1908 = vsyncpa [#allocation6], 1
    %1909 = vsyncpa [#allocation9], 1
    %1910 = vsyncpa [#allocation4], 1
    %s1911 = scalar_lea.sflag [#allocation4], 1
    %1912 = vsyncpa %s1911, 1

</llo_original>
